<compile_context>
chip_gen: v5e
topology: v5e:2x2
jax: 0.10.0
libtpu: 0.0.40
codegen_flags: <defaults>
</compile_context>

<pallas_src>
import jax
import jax.numpy as jnp
from jax.experimental import pallas as pl
from jax.experimental.pallas import tpu as pltpu

M_IN = 100          # branch input width
T_IN = 2            # trunk input width (x, t)
HID = 50            # hidden / output width of every MLP
N_LAYERS = 6        # Linear layers per MLP (last hidden Linear duplicated)

PACK = 256          # packed lane width for the fused block-diagonal network
BLK = 64            # lanes per sub-network block
OFF_R, OFF_I, OFF_T = 0, 64, 128   # lane offsets of real / imag / trunk blocks
T_PAD = 8           # trunk input padded to 8 lanes


# ----------------------------------------------------------------------------
# Pallas kernel: one batch tile of the whole DeepONet forward.
# ----------------------------------------------------------------------------
def deeponet_kernel(ur_ref, ui_ref, y_ref,
                    w0r_ref, w0i_ref, w0t_ref, wh_ref, b_ref,
                    out_ref):
    f32 = jnp.float32
    bf16 = jnp.bfloat16

    # Layer 0: three inputs feed disjoint column blocks of the packed hidden.
    h = jnp.dot(ur_ref[...].astype(bf16), w0r_ref[...],
                preferred_element_type=f32)
    h = h + jnp.dot(ui_ref[...].astype(bf16), w0i_ref[...],
                    preferred_element_type=f32)
    h = h + jnp.dot(y_ref[...].astype(bf16), w0t_ref[...],
                    preferred_element_type=f32)
    h = jnp.tanh(h + b_ref[0])                         # (TILE_N, 256) f32

    # Layers 1..5: packed block-diagonal (256,256); tanh on all but the last.
    for l in range(N_LAYERS - 1):
        h = jnp.dot(h.astype(bf16), wh_ref[l],
                    preferred_element_type=f32) + b_ref[l + 1]
        if l < N_LAYERS - 2:
            h = jnp.tanh(h)

    # Combine: dead lanes of the last (linear) layer are exactly zero, so the
    # 64-lane block sums equal the 50-wide dot products.
    b_real = h[:, OFF_R:OFF_R + BLK]
    b_imag = h[:, OFF_I:OFF_I + BLK]
    trunk = h[:, OFF_T:OFF_T + BLK]
    out_r = jnp.sum(b_real * trunk, axis=1, keepdims=True)   # (TILE_N, 1)
    out_i = jnp.sum(b_imag * trunk, axis=1, keepdims=True)   # (TILE_N, 1)
    out_ref[...] = jnp.concatenate([out_r, out_i], axis=1)   # (TILE_N, 2)


# ----------------------------------------------------------------------------
# Wrapper: batch grid, resident weights, batch padding / unpadding.
# ----------------------------------------------------------------------------
def deeponet_forward(u_real, u_imag, x, t, packed_params, tile_n=1024):
    """u_real/u_imag: (N, 100); x, t: (N,). Returns (out_real, out_imag)."""
    f32 = jnp.float32
    n = u_real.shape[0]
    w0r, w0i, w0t, wh, b = packed_params

    # Tile the batch; pad N up to a multiple of the tile.
    tile_n = int(min(tile_n, -(-n // 8) * 8))
    n_pad = -(-n // tile_n) * tile_n
    grid = (n_pad // tile_n,)

    def pad_rows(a):
        return jnp.pad(a.astype(f32), ((0, n_pad - n), (0, 0)))

    ur = pad_rows(u_real)
    ui = pad_rows(u_imag)
    y8 = jnp.zeros((n_pad, T_PAD), f32)
    y8 = y8.at[:n, 0].set(x.astype(f32)).at[:n, 1].set(t.astype(f32))

    flops_row = 2 * (2 * M_IN * PACK + T_PAD * PACK
                     + (N_LAYERS - 1) * PACK * PACK) + 4 * BLK
    weight_bytes = (2 * M_IN * PACK + T_PAD * PACK
                    + (N_LAYERS - 1) * PACK * PACK) * 2 + N_LAYERS * PACK * 4
    cost = pl.CostEstimate(
        flops=flops_row * n_pad,
        transcendentals=(N_LAYERS - 1) * PACK * n_pad,
        bytes_accessed=n_pad * (2 * M_IN + T_PAD + 2) * 4 + weight_bytes,
    )

    out = pl.pallas_call(
        deeponet_kernel,
        out_shape=jax.ShapeDtypeStruct((n_pad, 2), f32),
        grid_spec=pltpu.PrefetchScalarGridSpec(
            num_scalar_prefetch=0,
            grid=grid,
            in_specs=[
                pl.BlockSpec((tile_n, M_IN), lambda i: (i, 0)),
                pl.BlockSpec((tile_n, M_IN), lambda i: (i, 0)),
                pl.BlockSpec((tile_n, T_PAD), lambda i: (i, 0)),
                # Weights / biases: constant index_map -> DMA once, resident.
                pl.BlockSpec((M_IN, PACK), lambda i: (0, 0)),
                pl.BlockSpec((M_IN, PACK), lambda i: (0, 0)),
                pl.BlockSpec((T_PAD, PACK), lambda i: (0, 0)),
                pl.BlockSpec((N_LAYERS - 1, PACK, PACK), lambda i: (0, 0, 0)),
                pl.BlockSpec((N_LAYERS, 1, PACK), lambda i: (0, 0, 0)),
            ],
            out_specs=pl.BlockSpec((tile_n, 2), lambda i: (i, 0)),
        ),
        compiler_params=pltpu.CompilerParams(
            dimension_semantics=("parallel",),
            vmem_limit_bytes=32 * 1024 * 1024,
        ),
        cost_estimate=cost,
    )(ur, ui, y8, w0r, w0i, w0t, wh, b)

    return out[:n, 0], out[:n, 1]


# ----------------------------------------------------------------------------
# Parameter construction (PyTorch nn.Linear-style uniform init) and packing
# into the fused block-diagonal layout.
# ----------------------------------------------------------------------------
def make_mlp_raw(key, layers):
    # `layers` like [in, 50, 50, 50, 50, 50]; the reference MLP duplicates the
    # last Linear, giving N_LAYERS linear layers total.
    dims = list(zip(layers[:-1], layers[1:])) + [(layers[-2], layers[-1])]
    assert len(dims) == N_LAYERS
    params = []
    for fan_in, fan_out in dims:
        key, kw, kb = jax.random.split(key, 3)
        bound = 1.0 / (fan_in ** 0.5)
        w = jax.random.uniform(kw, (fan_in, fan_out), jnp.float32, -bound, bound)
        bias = jax.random.uniform(kb, (fan_out,), jnp.float32, -bound, bound)
        params.append((w, bias))
    return params, key


def pack_params(real_p, imag_p, trunk_p):
    f32, bf16 = jnp.float32, jnp.bfloat16

    # Layer-0 weights carry the lane placement of each sub-network.
    w0r = jnp.zeros((M_IN, PACK), f32).at[:, OFF_R:OFF_R + HID].set(real_p[0][0])
    w0i = jnp.zeros((M_IN, PACK), f32).at[:, OFF_I:OFF_I + HID].set(imag_p[0][0])
    w0t = jnp.zeros((T_PAD, PACK), f32).at[:T_IN, OFF_T:OFF_T + HID].set(trunk_p[0][0])

    # Layers 1..5: block-diagonal (256, 256); cross blocks are exactly zero.
    wh = jnp.zeros((N_LAYERS - 1, PACK, PACK), f32)
    for l in range(1, N_LAYERS):
        wh = wh.at[l - 1, OFF_R:OFF_R + HID, OFF_R:OFF_R + HID].set(real_p[l][0])
        wh = wh.at[l - 1, OFF_I:OFF_I + HID, OFF_I:OFF_I + HID].set(imag_p[l][0])
        wh = wh.at[l - 1, OFF_T:OFF_T + HID, OFF_T:OFF_T + HID].set(trunk_p[l][0])

    # Biases (kept in f32).
    b = jnp.zeros((N_LAYERS, 1, PACK), f32)
    for l in range(N_LAYERS):
        b = b.at[l, 0, OFF_R:OFF_R + HID].set(real_p[l][1])
        b = b.at[l, 0, OFF_I:OFF_I + HID].set(imag_p[l][1])
        b = b.at[l, 0, OFF_T:OFF_T + HID].set(trunk_p[l][1])

    return (w0r.astype(bf16), w0i.astype(bf16), w0t.astype(bf16),
            wh.astype(bf16), b)


def reference_forward(u_real, u_imag, x, t, real_p, imag_p, trunk_p):
    """Plain-JAX reference: three separate MLPs (same bf16 rounding as kernel)."""
    f32, bf16 = jnp.float32, jnp.bfloat16

    def mlp(xv, params):
        xv = xv.astype(f32)
        for l, (w, bias) in enumerate(params):
            wq = w.astype(bf16).astype(f32)
            xq = xv.astype(bf16).astype(f32)
            xv = xq @ wq + bias
            if l < len(params) - 1:
                xv = jnp.tanh(xv)
        return xv

    b_r = mlp(u_real, real_p)
    b_i = mlp(u_imag, imag_p)
    y = jnp.stack([x, t], axis=1)
    tr = mlp(y, trunk_p)
    return jnp.sum(b_r * tr, axis=1), jnp.sum(b_i * tr, axis=1)


if __name__ == "__main__":
    key = jax.random.PRNGKey(0)

    branch_layers = [M_IN, HID, HID, HID, HID, HID]
    trunk_layers = [T_IN, HID, HID, HID, HID, HID]

    real_p, key = make_mlp_raw(key, branch_layers)
    imag_p, key = make_mlp_raw(key, branch_layers)
    trunk_p, key = make_mlp_raw(key, trunk_layers)
    packed = pack_params(real_p, imag_p, trunk_p)

    # Small batch of synthetic inputs (N not a multiple of the tile, so the
    # batch-padding path and a multi-step grid are both exercised).
    n = 200
    key, k1, k2, k3, k4 = jax.random.split(key, 5)
    u_real = jax.random.normal(k1, (n, M_IN), jnp.float32)
    u_imag = jax.random.normal(k2, (n, M_IN), jnp.float32)
    x_coord = jax.random.uniform(k3, (n,), jnp.float32)
    t_coord = jax.random.uniform(k4, (n,), jnp.float32)

    out_r, out_i = deeponet_forward(u_real, u_imag, x_coord, t_coord, packed,
                                    tile_n=64)
    jax.block_until_ready((out_r, out_i))

    ref_r, ref_i = reference_forward(u_real, u_imag, x_coord, t_coord,
                                     real_p, imag_p, trunk_p)
    assert out_r.shape == (n,) and out_i.shape == (n,)
    assert jnp.allclose(out_r, ref_r, atol=1e-3, rtol=1e-3), \
        float(jnp.max(jnp.abs(out_r - ref_r)))
    assert jnp.allclose(out_i, ref_i, atol=1e-3, rtol=1e-3), \
        float(jnp.max(jnp.abs(out_i - ref_i)))

    # TODO(synk): training loop / loss_pde autograd terms are host-side PyTorch
    # logic, not part of the forward pass, and are intentionally not ported.
    print("KERNEL_OK")
</pallas_src>

<mosaic_0001>
module attributes {stable_mosaic.version = 11 : i64} {
  func.func @deeponet_kernel(%arg0: i32, %arg1: memref<64x100xf32, #tpu.memory_space<vmem>>, %arg2: memref<64x100xf32, #tpu.memory_space<vmem>>, %arg3: memref<64x8xf32, #tpu.memory_space<vmem>>, %arg4: memref<100x256xbf16, #tpu.memory_space<vmem>>, %arg5: memref<100x256xbf16, #tpu.memory_space<vmem>>, %arg6: memref<8x256xbf16, #tpu.memory_space<vmem>>, %arg7: memref<5x256x256xbf16, #tpu.memory_space<vmem>>, %arg8: memref<6x1x256xf32, #tpu.memory_space<vmem>>, %arg9: memref<64x2xf32, #tpu.memory_space<vmem>>) attributes {dimension_semantics = [#tpu.dimension_semantics<parallel>], iteration_bounds = array<i64: 4>, scalar_prefetch = 0 : i64, scratch_operands = 0 : i64, tpu.core_type = #tpu.core_type<tc>, window_params = [{transform_indices = @transform_0, window_bounds = array<i64: 64, 100>}, {transform_indices = @transform_1, window_bounds = array<i64: 64, 100>}, {transform_indices = @transform_2, window_bounds = array<i64: 64, 8>}, {pipeline_mode = #tpu.pipeline_mode<synchronous>, transform_indices = @transform_3, window_bounds = array<i64: 100, 256>}, {pipeline_mode = #tpu.pipeline_mode<synchronous>, transform_indices = @transform_4, window_bounds = array<i64: 100, 256>}, {pipeline_mode = #tpu.pipeline_mode<synchronous>, transform_indices = @transform_5, window_bounds = array<i64: 8, 256>}, {pipeline_mode = #tpu.pipeline_mode<synchronous>, transform_indices = @transform_6, window_bounds = array<i64: 5, 256, 256>}, {pipeline_mode = #tpu.pipeline_mode<synchronous>, transform_indices = @transform_7, window_bounds = array<i64: 6, 1, 256>}, {transform_indices = @transform_8, window_bounds = array<i64: 64, 2>}]} {
    %c0 = arith.constant 0 : index
    %c0_0 = arith.constant 0 : index
    %0 = vector.load %arg1[%c0, %c0_0] : memref<64x100xf32, #tpu.memory_space<vmem>>, vector<64x100xf32>
    %1 = arith.truncf %0 : vector<64x100xf32> to vector<64x100xbf16>
    %c0_1 = arith.constant 0 : index
    %c0_2 = arith.constant 0 : index
    %2 = vector.load %arg4[%c0_1, %c0_2] : memref<100x256xbf16, #tpu.memory_space<vmem>>, vector<100x256xbf16>
    %cst = arith.constant dense<0.000000e+00> : vector<64x256xf32>
    %3 = tpu.matmul %1, %2, %cst {dimension_numbers = #tpu.dot_dimension_numbers<[1], [0], [0], [1], [0, 0, 1, 1], [], []>} : vector<64x100xbf16>, vector<100x256xbf16>, vector<64x256xf32> -> vector<64x256xf32>
    %c0_3 = arith.constant 0 : index
    %c0_4 = arith.constant 0 : index
    %4 = vector.load %arg2[%c0_3, %c0_4] : memref<64x100xf32, #tpu.memory_space<vmem>>, vector<64x100xf32>
    %5 = arith.truncf %4 : vector<64x100xf32> to vector<64x100xbf16>
    %c0_5 = arith.constant 0 : index
    %c0_6 = arith.constant 0 : index
    %6 = vector.load %arg5[%c0_5, %c0_6] : memref<100x256xbf16, #tpu.memory_space<vmem>>, vector<100x256xbf16>
    %cst_7 = arith.constant dense<0.000000e+00> : vector<64x256xf32>
    %7 = tpu.matmul %5, %6, %cst_7 {dimension_numbers = #tpu.dot_dimension_numbers<[1], [0], [0], [1], [0, 0, 1, 1], [], []>} : vector<64x100xbf16>, vector<100x256xbf16>, vector<64x256xf32> -> vector<64x256xf32>
    %8 = arith.addf %3, %7 : vector<64x256xf32>
    %c0_8 = arith.constant 0 : index
    %c0_9 = arith.constant 0 : index
    %9 = vector.load %arg3[%c0_8, %c0_9] : memref<64x8xf32, #tpu.memory_space<vmem>>, vector<64x8xf32>
    %10 = arith.truncf %9 : vector<64x8xf32> to vector<64x8xbf16>
    %c0_10 = arith.constant 0 : index
    %c0_11 = arith.constant 0 : index
    %11 = vector.load %arg6[%c0_10, %c0_11] : memref<8x256xbf16, #tpu.memory_space<vmem>>, vector<8x256xbf16>
    %cst_12 = arith.constant dense<0.000000e+00> : vector<64x256xf32>
    %12 = tpu.matmul %10, %11, %cst_12 {dimension_numbers = #tpu.dot_dimension_numbers<[1], [0], [0], [1], [0, 0, 1, 1], [], []>} : vector<64x8xbf16>, vector<8x256xbf16>, vector<64x256xf32> -> vector<64x256xf32>
    %13 = arith.addf %8, %12 : vector<64x256xf32>
    %c0_13 = arith.constant 0 : index
    %c0_14 = arith.constant 0 : index
    %c0_15 = arith.constant 0 : index
    %14 = vector.load %arg8[%c0_13, %c0_14, %c0_15] : memref<6x1x256xf32, #tpu.memory_space<vmem>>, vector<1x1x256xf32>
    %15 = vector.shape_cast %14 : vector<1x1x256xf32> to vector<1x256xf32>
    %16 = vector.broadcast %15 : vector<1x256xf32> to vector<64x256xf32>
    %17 = arith.addf %13, %16 : vector<64x256xf32>
    %18 = math.tanh %17 : vector<64x256xf32>
    %19 = arith.truncf %18 : vector<64x256xf32> to vector<64x256xbf16>
    %c0_16 = arith.constant 0 : index
    %c0_17 = arith.constant 0 : index
    %c0_18 = arith.constant 0 : index
    %20 = vector.load %arg7[%c0_16, %c0_17, %c0_18] : memref<5x256x256xbf16, #tpu.memory_space<vmem>>, vector<1x256x256xbf16>
    %21 = vector.shape_cast %20 : vector<1x256x256xbf16> to vector<256x256xbf16>
    %cst_19 = arith.constant dense<0.000000e+00> : vector<64x256xf32>
    %22 = tpu.matmul %19, %21, %cst_19 {dimension_numbers = #tpu.dot_dimension_numbers<[1], [0], [0], [1], [0, 0, 1, 1], [], []>} : vector<64x256xbf16>, vector<256x256xbf16>, vector<64x256xf32> -> vector<64x256xf32>
    %c1 = arith.constant 1 : index
    %c0_20 = arith.constant 0 : index
    %c0_21 = arith.constant 0 : index
    %23 = vector.load %arg8[%c1, %c0_20, %c0_21] : memref<6x1x256xf32, #tpu.memory_space<vmem>>, vector<1x1x256xf32>
    %24 = vector.shape_cast %23 : vector<1x1x256xf32> to vector<1x256xf32>
    %25 = vector.broadcast %24 : vector<1x256xf32> to vector<64x256xf32>
    %26 = arith.addf %22, %25 : vector<64x256xf32>
    %27 = math.tanh %26 : vector<64x256xf32>
    %28 = arith.truncf %27 : vector<64x256xf32> to vector<64x256xbf16>
    %c1_22 = arith.constant 1 : index
    %c0_23 = arith.constant 0 : index
    %c0_24 = arith.constant 0 : index
    %29 = vector.load %arg7[%c1_22, %c0_23, %c0_24] : memref<5x256x256xbf16, #tpu.memory_space<vmem>>, vector<1x256x256xbf16>
    %30 = vector.shape_cast %29 : vector<1x256x256xbf16> to vector<256x256xbf16>
    %cst_25 = arith.constant dense<0.000000e+00> : vector<64x256xf32>
    %31 = tpu.matmul %28, %30, %cst_25 {dimension_numbers = #tpu.dot_dimension_numbers<[1], [0], [0], [1], [0, 0, 1, 1], [], []>} : vector<64x256xbf16>, vector<256x256xbf16>, vector<64x256xf32> -> vector<64x256xf32>
    %c2 = arith.constant 2 : index
    %c0_26 = arith.constant 0 : index
    %c0_27 = arith.constant 0 : index
    %32 = vector.load %arg8[%c2, %c0_26, %c0_27] : memref<6x1x256xf32, #tpu.memory_space<vmem>>, vector<1x1x256xf32>
    %33 = vector.shape_cast %32 : vector<1x1x256xf32> to vector<1x256xf32>
    %34 = vector.broadcast %33 : vector<1x256xf32> to vector<64x256xf32>
    %35 = arith.addf %31, %34 : vector<64x256xf32>
    %36 = math.tanh %35 : vector<64x256xf32>
    %37 = arith.truncf %36 : vector<64x256xf32> to vector<64x256xbf16>
    %c2_28 = arith.constant 2 : index
    %c0_29 = arith.constant 0 : index
    %c0_30 = arith.constant 0 : index
    %38 = vector.load %arg7[%c2_28, %c0_29, %c0_30] : memref<5x256x256xbf16, #tpu.memory_space<vmem>>, vector<1x256x256xbf16>
    %39 = vector.shape_cast %38 : vector<1x256x256xbf16> to vector<256x256xbf16>
    %cst_31 = arith.constant dense<0.000000e+00> : vector<64x256xf32>
    %40 = tpu.matmul %37, %39, %cst_31 {dimension_numbers = #tpu.dot_dimension_numbers<[1], [0], [0], [1], [0, 0, 1, 1], [], []>} : vector<64x256xbf16>, vector<256x256xbf16>, vector<64x256xf32> -> vector<64x256xf32>
    %c3 = arith.constant 3 : index
    %c0_32 = arith.constant 0 : index
    %c0_33 = arith.constant 0 : index
    %41 = vector.load %arg8[%c3, %c0_32, %c0_33] : memref<6x1x256xf32, #tpu.memory_space<vmem>>, vector<1x1x256xf32>
    %42 = vector.shape_cast %41 : vector<1x1x256xf32> to vector<1x256xf32>
    %43 = vector.broadcast %42 : vector<1x256xf32> to vector<64x256xf32>
    %44 = arith.addf %40, %43 : vector<64x256xf32>
    %45 = math.tanh %44 : vector<64x256xf32>
    %46 = arith.truncf %45 : vector<64x256xf32> to vector<64x256xbf16>
    %c3_34 = arith.constant 3 : index
    %c0_35 = arith.constant 0 : index
    %c0_36 = arith.constant 0 : index
    %47 = vector.load %arg7[%c3_34, %c0_35, %c0_36] : memref<5x256x256xbf16, #tpu.memory_space<vmem>>, vector<1x256x256xbf16>
    %48 = vector.shape_cast %47 : vector<1x256x256xbf16> to vector<256x256xbf16>
    %cst_37 = arith.constant dense<0.000000e+00> : vector<64x256xf32>
    %49 = tpu.matmul %46, %48, %cst_37 {dimension_numbers = #tpu.dot_dimension_numbers<[1], [0], [0], [1], [0, 0, 1, 1], [], []>} : vector<64x256xbf16>, vector<256x256xbf16>, vector<64x256xf32> -> vector<64x256xf32>
    %c4 = arith.constant 4 : index
    %c0_38 = arith.constant 0 : index
    %c0_39 = arith.constant 0 : index
    %50 = vector.load %arg8[%c4, %c0_38, %c0_39] : memref<6x1x256xf32, #tpu.memory_space<vmem>>, vector<1x1x256xf32>
    %51 = vector.shape_cast %50 : vector<1x1x256xf32> to vector<1x256xf32>
    %52 = vector.broadcast %51 : vector<1x256xf32> to vector<64x256xf32>
    %53 = arith.addf %49, %52 : vector<64x256xf32>
    %54 = math.tanh %53 : vector<64x256xf32>
    %55 = arith.truncf %54 : vector<64x256xf32> to vector<64x256xbf16>
    %c4_40 = arith.constant 4 : index
    %c0_41 = arith.constant 0 : index
    %c0_42 = arith.constant 0 : index
    %56 = vector.load %arg7[%c4_40, %c0_41, %c0_42] : memref<5x256x256xbf16, #tpu.memory_space<vmem>>, vector<1x256x256xbf16>
    %57 = vector.shape_cast %56 : vector<1x256x256xbf16> to vector<256x256xbf16>
    %cst_43 = arith.constant dense<0.000000e+00> : vector<64x256xf32>
    %58 = tpu.matmul %55, %57, %cst_43 {dimension_numbers = #tpu.dot_dimension_numbers<[1], [0], [0], [1], [0, 0, 1, 1], [], []>} : vector<64x256xbf16>, vector<256x256xbf16>, vector<64x256xf32> -> vector<64x256xf32>
    %c5 = arith.constant 5 : index
    %c0_44 = arith.constant 0 : index
    %c0_45 = arith.constant 0 : index
    %59 = vector.load %arg8[%c5, %c0_44, %c0_45] : memref<6x1x256xf32, #tpu.memory_space<vmem>>, vector<1x1x256xf32>
    %60 = vector.shape_cast %59 : vector<1x1x256xf32> to vector<1x256xf32>
    %61 = vector.broadcast %60 : vector<1x256xf32> to vector<64x256xf32>
    %62 = arith.addf %58, %61 : vector<64x256xf32>
    %63 = vector.extract_strided_slice %62 {offsets = [0, 0], sizes = [64, 64], strides = [1, 1]} : vector<64x256xf32> to vector<64x64xf32>
    %64 = vector.extract_strided_slice %62 {offsets = [0, 64], sizes = [64, 64], strides = [1, 1]} : vector<64x256xf32> to vector<64x64xf32>
    %65 = vector.extract_strided_slice %62 {offsets = [0, 128], sizes = [64, 64], strides = [1, 1]} : vector<64x256xf32> to vector<64x64xf32>
    %66 = arith.mulf %63, %65 : vector<64x64xf32>
    %cst_46 = arith.constant dense<0.000000e+00> : vector<64xf32>
    %67 = vector.multi_reduction <add>, %66, %cst_46 [1] : vector<64x64xf32> to vector<64xf32>
    %68 = vector.shape_cast %67 : vector<64xf32> to vector<64x1xf32>
    %69 = arith.mulf %64, %65 : vector<64x64xf32>
    %cst_47 = arith.constant dense<0.000000e+00> : vector<64xf32>
    %70 = vector.multi_reduction <add>, %69, %cst_47 [1] : vector<64x64xf32> to vector<64xf32>
    %71 = vector.shape_cast %70 : vector<64xf32> to vector<64x1xf32>
    %72 = tpu.concatenate %68, %71 in 1 : vector<64x1xf32>, vector<64x1xf32> -> vector<64x2xf32>
    %c0_48 = arith.constant 0 : index
    %c0_49 = arith.constant 0 : index
    %73 = vector.load %arg9[%c0_48, %c0_49] : memref<64x2xf32, #tpu.memory_space<vmem>>, vector<64x2xf32>
    tpu.vector_store %arg9[%c0_48, %c0_49], %72 {strides = array<i32>} : memref<64x2xf32, #tpu.memory_space<vmem>>, vector<64x2xf32>,
    return
  }
  func.func @transform_0(%arg0: i32) -> (i32, i32) {
    %c0_i32 = arith.constant 0 : i32
    %c0_i32_0 = arith.constant 0 : i32
    return %arg0, %c0_i32 : i32, i32
  }
  func.func @transform_1(%arg0: i32) -> (i32, i32) {
    %c0_i32 = arith.constant 0 : i32
    %c0_i32_0 = arith.constant 0 : i32
    return %arg0, %c0_i32 : i32, i32
  }
  func.func @transform_2(%arg0: i32) -> (i32, i32) {
    %c0_i32 = arith.constant 0 : i32
    %c0_i32_0 = arith.constant 0 : i32
    return %arg0, %c0_i32 : i32, i32
  }
  func.func @transform_3(%arg0: i32) -> (i32, i32) {
    %c0_i32 = arith.constant 0 : i32
    %c0_i32_0 = arith.constant 0 : i32
    %c0_i32_1 = arith.constant 0 : i32
    return %c0_i32, %c0_i32_0 : i32, i32
  }
  func.func @transform_4(%arg0: i32) -> (i32, i32) {
    %c0_i32 = arith.constant 0 : i32
    %c0_i32_0 = arith.constant 0 : i32
    %c0_i32_1 = arith.constant 0 : i32
    return %c0_i32, %c0_i32_0 : i32, i32
  }
  func.func @transform_5(%arg0: i32) -> (i32, i32) {
    %c0_i32 = arith.constant 0 : i32
    %c0_i32_0 = arith.constant 0 : i32
    %c0_i32_1 = arith.constant 0 : i32
    return %c0_i32, %c0_i32_0 : i32, i32
  }
  func.func @transform_6(%arg0: i32) -> (i32, i32, i32) {
    %c0_i32 = arith.constant 0 : i32
    %c0_i32_0 = arith.constant 0 : i32
    %c0_i32_1 = arith.constant 0 : i32
    %c0_i32_2 = arith.constant 0 : i32
    return %c0_i32, %c0_i32_0, %c0_i32_1 : i32, i32, i32
  }
  func.func @transform_7(%arg0: i32) -> (i32, i32, i32) {
    %c0_i32 = arith.constant 0 : i32
    %c0_i32_0 = arith.constant 0 : i32
    %c0_i32_1 = arith.constant 0 : i32
    %c0_i32_2 = arith.constant 0 : i32
    return %c0_i32, %c0_i32_0, %c0_i32_1 : i32, i32, i32
  }
  func.func @transform_8(%arg0: i32) -> (i32, i32) {
    %c0_i32 = arith.constant 0 : i32
    %c0_i32_0 = arith.constant 0 : i32
    return %arg0, %c0_i32 : i32, i32
  }
}

</mosaic_0001>

<llo_original>
// kernel: tpu_custom_call.1
$region0: #{tpu_custom_call.1}
  #allocation0 [shape = 'u32[]', space=smem, size = 0x4, offset = 0x4, fixed_abs, tag = 'smem constant byte address 0x4 - core index']
  #allocation1 [shape = 'u32[72,128]{1,0:T(1,128)}', space=vmem, size = 0x9000, scoped, tag = 'internal scratch']
  %s0 = inlined_call_operand.vmem [shape: f32[256,100], index: 0, kind: input, shape index: {}]
  %s1 = inlined_call_operand.vmem [shape: f32[256,100], index: 1, kind: input, shape index: {}]
  %s2 = inlined_call_operand.vmem [shape: f32[256,8], index: 2, kind: input, shape index: {}]
  %s3 = inlined_call_operand.vmem [shape: bf16[100,256], index: 3, kind: input, shape index: {}]
  %s4 = inlined_call_operand.vmem [shape: bf16[100,256], index: 4, kind: input, shape index: {}]
  %s5 = inlined_call_operand.vmem [shape: bf16[8,256], index: 5, kind: input, shape index: {}]
  %s6 = inlined_call_operand.hbm [shape: bf16[5,256,256], index: 6, kind: input, shape index: {}]
  %s7 = inlined_call_operand.vmem [shape: f32[6,1,256], index: 7, kind: input, shape index: {}]
  %s8 = inlined_call_operand.vmem [shape: f32[256,2], index: 8, kind: output, shape index: {}]
  %s9 = sld [smem:[#allocation0]]
  $region69: #{tpu_custom_call.1} parent=0
    _
  %s11 = ssub.s32 1, %s9
  %s12 = scalar_select 0, %s11, %s9
  $region1: #{tpu_custom_call.1} parent=0
    #allocation2 [shape = 'u8[655360]{0}', space=vmem, size = 0xa0000, scoped, tag = 'input window, operand 6, single buffered']
    #allocation3 [shape = 's32[2]{0}', space=sflag, size = 0x8, scoped, tag = 'scoped memory for tpu_custom_call.1']
    %13 = vsyncpa [#allocation3], 0
    loop: start=0, step=1, limit=6
    $region2: #{tpu_custom_call.1} parent=1 // loop_pre_header
      _
    $region3: #{tpu_custom_call.1} parent=1 // loop_header
      %s15 = sphi 0, %s19
      %p16 = scmp.ge.s32.totalorder %s15, 6
      %s25 = sphi 0, %s27
      %s28 = sphi 0, %s25
      %s29 = sphi 0, %s28
      %s45 = sphi 0, %s29
      %s51 = sphi 0, %s53
      %s54 = sphi 0, %s51
      %s55 = sphi 0, %s54
      %s71 = sphi 0, %s55
      %s77 = sphi 0, %s79
      %s80 = sphi 0, %s77
      %s81 = sphi 0, %s80
      %s97 = sphi 0, %s81
      %s101 = sphi 0, %s101
      %s103 = sphi 0, %s101
      %s104 = sphi 0, %s103
      %s118 = sphi 0, %s104
      %s122 = sphi 0, %s122
      %s124 = sphi 0, %s122
      %s125 = sphi 0, %s124
      %s139 = sphi 0, %s125
      %s143 = sphi 0, %s143
      %s145 = sphi 0, %s143
      %s146 = sphi 0, %s145
      %s160 = sphi 0, %s146
      %s164 = sphi 0, %s164
      %s166 = sphi 0, %s164
      %s167 = sphi 0, %s166
      %s181 = sphi 0, %s167
      %s185 = sphi 0, %s185
      %s187 = sphi 0, %s185
      %s188 = sphi 0, %s187
      %s202 = sphi 0, %s188
      %s208 = sphi 0, %s210
      %s211 = sphi 0, %s208
      %s212 = sphi 0, %s211
      %s228 = sphi 0, %s212
    $region4: #{tpu_custom_call.1} parent=1 // loop_header_branch
      %18 = sbr.rel (%p16) target = $region8
    $region5: #{tpu_custom_call.1} parent=1 // loop_body
      %s20 = ssub.s32 %s15, 1
      %s21 = ssub.s32 %s15, 2
      %s22 = sadd.s32 %s15, 1
      %s23 = ssub.s32 %s15, %s22
      %p24 = scmp.eq.s32.totalorder %s23, 0
      %s26 = sadd.s32 %s25, 1
      %s27 = scalar_select %p24, %s25, %s26
      %p30 = pneg %p24
      %p31 = scmp.eq.s32.totalorder %s15, 3
      %p32 = por %p30, %p31
      %p33 = scmp.ne.s32.totalorder %s25, %s28
      %p34 = scmp.eq.s32.totalorder %s15, 0
      %p35 = por %p33, %p34
      %p36 = scmp.ne.s32.totalorder %s25, %s28
      %p37 = scmp.eq.s32.totalorder %s20, 3
      %p38 = por %p36, %p37
      %p39 = scmp.ne.s32.totalorder %s28, %s29
      %p40 = scmp.eq.s32.totalorder %s20, 0
      %p41 = por %p39, %p40
      %p42 = scmp.ne.s32.totalorder %s28, %s29
      %p43 = scmp.eq.s32.totalorder %s21, 3
      %p44 = por %p42, %p43
      %p46 = scmp.ne.s32.totalorder %s29, %s45
      %p47 = scmp.eq.s32.totalorder %s21, 0
      %p48 = por %p46, %p47
      %s49 = ssub.s32 %s15, %s22
      %p50 = scmp.eq.s32.totalorder %s49, 0
      %s52 = sadd.s32 %s51, 1
      %s53 = scalar_select %p50, %s51, %s52
      %p56 = pneg %p50
      %p57 = scmp.eq.s32.totalorder %s15, 3
      %p58 = por %p56, %p57
      %p59 = scmp.ne.s32.totalorder %s51, %s54
      %p60 = scmp.eq.s32.totalorder %s15, 0
      %p61 = por %p59, %p60
      %p62 = scmp.ne.s32.totalorder %s51, %s54
      %p63 = scmp.eq.s32.totalorder %s20, 3
      %p64 = por %p62, %p63
      %p65 = scmp.ne.s32.totalorder %s54, %s55
      %p66 = scmp.eq.s32.totalorder %s20, 0
      %p67 = por %p65, %p66
      %p68 = scmp.ne.s32.totalorder %s54, %s55
      %p69 = scmp.eq.s32.totalorder %s21, 3
      %p70 = por %p68, %p69
      %p72 = scmp.ne.s32.totalorder %s55, %s71
      %p73 = scmp.eq.s32.totalorder %s21, 0
      %p74 = por %p72, %p73
      %s75 = ssub.s32 %s15, %s22
      %p76 = scmp.eq.s32.totalorder %s75, 0
      %s78 = sadd.s32 %s77, 1
      %s79 = scalar_select %p76, %s77, %s78
      %p82 = pneg %p76
      %p83 = scmp.eq.s32.totalorder %s15, 3
      %p84 = por %p82, %p83
      %p85 = scmp.ne.s32.totalorder %s77, %s80
      %p86 = scmp.eq.s32.totalorder %s15, 0
      %p87 = por %p85, %p86
      %p88 = scmp.ne.s32.totalorder %s77, %s80
      %p89 = scmp.eq.s32.totalorder %s20, 3
      %p90 = por %p88, %p89
      %p91 = scmp.ne.s32.totalorder %s80, %s81
      %p92 = scmp.eq.s32.totalorder %s20, 0
      %p93 = por %p91, %p92
      %p94 = scmp.ne.s32.totalorder %s80, %s81
      %p95 = scmp.eq.s32.totalorder %s21, 3
      %p96 = por %p94, %p95
      %p98 = scmp.ne.s32.totalorder %s81, %s97
      %p99 = scmp.eq.s32.totalorder %s21, 0
      %p100 = por %p98, %p99
      %s102 = sadd.s32 %s101, 1
      %p105 = scmp.eq.s32.totalorder %s15, 3
      %p106 = scmp.ne.s32.totalorder %s101, %s103
      %p107 = scmp.eq.s32.totalorder %s15, 0
      %p108 = por %p106, %p107
      %p109 = scmp.ne.s32.totalorder %s101, %s103
      %p110 = scmp.eq.s32.totalorder %s20, 3
      %p111 = por %p109, %p110
      %p112 = scmp.ne.s32.totalorder %s103, %s104
      %p113 = scmp.eq.s32.totalorder %s20, 0
      %p114 = por %p112, %p113
      %p115 = scmp.ne.s32.totalorder %s103, %s104
      %p116 = scmp.eq.s32.totalorder %s21, 3
      %p117 = por %p115, %p116
      %p119 = scmp.ne.s32.totalorder %s104, %s118
      %p120 = scmp.eq.s32.totalorder %s21, 0
      %p121 = por %p119, %p120
      %s123 = sadd.s32 %s122, 1
      %p126 = scmp.eq.s32.totalorder %s15, 3
      %p127 = scmp.ne.s32.totalorder %s122, %s124
      %p128 = scmp.eq.s32.totalorder %s15, 0
      %p129 = por %p127, %p128
      %p130 = scmp.ne.s32.totalorder %s122, %s124
      %p131 = scmp.eq.s32.totalorder %s20, 3
      %p132 = por %p130, %p131
      %p133 = scmp.ne.s32.totalorder %s124, %s125
      %p134 = scmp.eq.s32.totalorder %s20, 0
      %p135 = por %p133, %p134
      %p136 = scmp.ne.s32.totalorder %s124, %s125
      %p137 = scmp.eq.s32.totalorder %s21, 3
      %p138 = por %p136, %p137
      %p140 = scmp.ne.s32.totalorder %s125, %s139
      %p141 = scmp.eq.s32.totalorder %s21, 0
      %p142 = por %p140, %p141
      %s144 = sadd.s32 %s143, 1
      %p147 = scmp.eq.s32.totalorder %s15, 3
      %p148 = scmp.ne.s32.totalorder %s143, %s145
      %p149 = scmp.eq.s32.totalorder %s15, 0
      %p150 = por %p148, %p149
      %p151 = scmp.ne.s32.totalorder %s143, %s145
      %p152 = scmp.eq.s32.totalorder %s20, 3
      %p153 = por %p151, %p152
      %p154 = scmp.ne.s32.totalorder %s145, %s146
      %p155 = scmp.eq.s32.totalorder %s20, 0
      %p156 = por %p154, %p155
      %p157 = scmp.ne.s32.totalorder %s145, %s146
      %p158 = scmp.eq.s32.totalorder %s21, 3
      %p159 = por %p157, %p158
      %p161 = scmp.ne.s32.totalorder %s146, %s160
      %p162 = scmp.eq.s32.totalorder %s21, 0
      %p163 = por %p161, %p162
      %s165 = sadd.s32 %s164, 1
      %p168 = scmp.eq.s32.totalorder %s15, 3
      %p169 = scmp.ne.s32.totalorder %s164, %s166
      %p170 = scmp.eq.s32.totalorder %s15, 0
      %p171 = por %p169, %p170
      %p172 = scmp.ne.s32.totalorder %s164, %s166
      %p173 = scmp.eq.s32.totalorder %s20, 3
      %p174 = por %p172, %p173
      %p175 = scmp.ne.s32.totalorder %s166, %s167
      %p176 = scmp.eq.s32.totalorder %s20, 0
      %p177 = por %p175, %p176
      %p178 = scmp.ne.s32.totalorder %s166, %s167
      %p179 = scmp.eq.s32.totalorder %s21, 3
      %p180 = por %p178, %p179
      %p182 = scmp.ne.s32.totalorder %s167, %s181
      %p183 = scmp.eq.s32.totalorder %s21, 0
      %p184 = por %p182, %p183
      %s186 = sadd.s32 %s185, 1
      %p189 = scmp.eq.s32.totalorder %s15, 3
      %p190 = scmp.ne.s32.totalorder %s185, %s187
      %p191 = scmp.eq.s32.totalorder %s15, 0
      %p192 = por %p190, %p191
      %p193 = scmp.ne.s32.totalorder %s185, %s187
      %p194 = scmp.eq.s32.totalorder %s20, 3
      %p195 = por %p193, %p194
      %p196 = scmp.ne.s32.totalorder %s187, %s188
      %p197 = scmp.eq.s32.totalorder %s20, 0
      %p198 = por %p196, %p197
      %p199 = scmp.ne.s32.totalorder %s187, %s188
      %p200 = scmp.eq.s32.totalorder %s21, 3
      %p201 = por %p199, %p200
      %p203 = scmp.ne.s32.totalorder %s188, %s202
      %p204 = scmp.eq.s32.totalorder %s21, 0
      %p205 = por %p203, %p204
      %s206 = ssub.s32 %s15, %s22
      %p207 = scmp.eq.s32.totalorder %s206, 0
      %s209 = sadd.s32 %s208, 1
      %s210 = scalar_select %p207, %s208, %s209
      %p213 = pneg %p207
      %p214 = scmp.eq.s32.totalorder %s15, 3
      %p215 = por %p213, %p214
      %p216 = scmp.ne.s32.totalorder %s208, %s211
      %p217 = scmp.eq.s32.totalorder %s15, 0
      %p218 = por %p216, %p217
      %p219 = scmp.ne.s32.totalorder %s208, %s211
      %p220 = scmp.eq.s32.totalorder %s20, 3
      %p221 = por %p219, %p220
      %p222 = scmp.ne.s32.totalorder %s211, %s212
      %p223 = scmp.eq.s32.totalorder %s20, 0
      %p224 = por %p222, %p223
      %p225 = scmp.ne.s32.totalorder %s211, %s212
      %p226 = scmp.eq.s32.totalorder %s21, 3
      %p227 = por %p225, %p226
      %p229 = scmp.ne.s32.totalorder %s212, %s228
      %p230 = scmp.eq.s32.totalorder %s21, 0
      %p231 = por %p229, %p230
      %p232 = scmp.le.s32.totalorder 1, %s15
      %p233 = scmp.lt.s32.totalorder %s15, 5
      %p234 = pnand %p232, %p233
      %p235 = pneg %p234
      // Predicated region
      $region9: #{tpu_custom_call.1} parent=5 // pred_check
        _
      $region10: #{tpu_custom_call.1} parent=5 // pred_check_branch
        %237 = sbr.rel (%p234) target = $region12
      $region11: #{tpu_custom_call.1} parent=5 // pred_region
        %s238 = ssub.s32 %s15, 1
        // Predicated region
        $region13: #{tpu_custom_call.1} parent=11 // pred_check
          %p239 = pneg %p114
        $region14: #{tpu_custom_call.1} parent=11 // pred_check_branch
          %241 = sbr.rel (%p239) target = $region16
        $region15: #{tpu_custom_call.1} parent=11 // pred_region
          _
        $region16: #{tpu_custom_call.1} parent=11 // pred_fallthru
          _
        // Predicated region
        $region17: #{tpu_custom_call.1} parent=11 // pred_check
          %p242 = pneg %p135
        $region18: #{tpu_custom_call.1} parent=11 // pred_check_branch
          %244 = sbr.rel (%p242) target = $region20
        $region19: #{tpu_custom_call.1} parent=11 // pred_region
          _
        $region20: #{tpu_custom_call.1} parent=11 // pred_fallthru
          _
        // Predicated region
        $region21: #{tpu_custom_call.1} parent=11 // pred_check
          %p245 = pneg %p156
        $region22: #{tpu_custom_call.1} parent=11 // pred_check_branch
          %247 = sbr.rel (%p245) target = $region24
        $region23: #{tpu_custom_call.1} parent=11 // pred_region
          _
        $region24: #{tpu_custom_call.1} parent=11 // pred_fallthru
          _
        // Predicated region
        $region25: #{tpu_custom_call.1} parent=11 // pred_check
          %p248 = pneg %p177
        $region26: #{tpu_custom_call.1} parent=11 // pred_check_branch
          %250 = sbr.rel (%p248) target = $region28
        $region27: #{tpu_custom_call.1} parent=11 // pred_region
          %252 = vsyncadd [#allocation3], 0
          %s253 = sshll.u32 %s6, 4
          %s254 = int_to_ptr.hbm [resolvable:$true] %s253
          %s255 = sshll.u32 [#allocation2], 4
          %s256 = int_to_ptr.vmem [resolvable:$true] %s255
          %261 = dma.hbm_to_vmem [thread:$0]  %s254, 20480, %s256, [#allocation3], 128, 128, 8
        $region28: #{tpu_custom_call.1} parent=11 // pred_fallthru
          _
        // Predicated region
        $region29: #{tpu_custom_call.1} parent=11 // pred_check
          %p262 = pneg %p198
        $region30: #{tpu_custom_call.1} parent=11 // pred_check_branch
          %264 = sbr.rel (%p262) target = $region32
        $region31: #{tpu_custom_call.1} parent=11 // pred_region
          _
        $region32: #{tpu_custom_call.1} parent=11 // pred_fallthru
          _
      $region12: #{tpu_custom_call.1} parent=5 // pred_fallthru
        _
      %p265 = scmp.lt.s32.totalorder %s15, 4
      // Predicated region
      $region33: #{tpu_custom_call.1} parent=5 // pred_check
        %p266 = pneg %p265
      $region34: #{tpu_custom_call.1} parent=5 // pred_check_branch
        %268 = sbr.rel (%p266) target = $region36
      $region35: #{tpu_custom_call.1} parent=5 // pred_region
        // Predicated region
        $region37: #{tpu_custom_call.1} parent=35 // pred_check
          %p269 = pneg %p35
        $region38: #{tpu_custom_call.1} parent=35 // pred_check_branch
          %271 = sbr.rel (%p269) target = $region40
        $region39: #{tpu_custom_call.1} parent=35 // pred_region
          %s272 = smul.u32 8, %s15
          %p273 = scmp.lt.s32.totalorder %s272, 31
          %s274 = scalar_select %p273, %s272, 31
          %s275 = smul.addr %s274, 8
          %s276 = scalar_lea.vmem %s0, %s275
          %s277 = smul.u32 8, %s15
        $region40: #{tpu_custom_call.1} parent=35 // pred_fallthru
          _
        // Predicated region
        $region41: #{tpu_custom_call.1} parent=35 // pred_check
          %p278 = pneg %p61
        $region42: #{tpu_custom_call.1} parent=35 // pred_check_branch
          %280 = sbr.rel (%p278) target = $region44
        $region43: #{tpu_custom_call.1} parent=35 // pred_region
          %s281 = smul.u32 8, %s15
          %p282 = scmp.lt.s32.totalorder %s281, 31
          %s283 = scalar_select %p282, %s281, 31
          %s284 = smul.addr %s283, 8
          %s285 = scalar_lea.vmem %s1, %s284
          %s286 = smul.u32 8, %s15
        $region44: #{tpu_custom_call.1} parent=35 // pred_fallthru
          _
        // Predicated region
        $region45: #{tpu_custom_call.1} parent=35 // pred_check
          %p287 = pneg %p87
        $region46: #{tpu_custom_call.1} parent=35 // pred_check_branch
          %289 = sbr.rel (%p287) target = $region48
        $region47: #{tpu_custom_call.1} parent=35 // pred_region
          %s290 = smul.u32 8, %s15
          %p291 = scmp.lt.s32.totalorder %s290, 31
          %s292 = scalar_select %p291, %s290, 31
          %s293 = smul.addr %s292, 8
          %s294 = scalar_lea.vmem %s2, %s293
          %s295 = smul.u32 8, %s15
        $region48: #{tpu_custom_call.1} parent=35 // pred_fallthru
          _
      $region36: #{tpu_custom_call.1} parent=5 // pred_fallthru
        _
      %p296 = scmp.le.s32.totalorder 1, %s15
      %p297 = scmp.lt.s32.totalorder %s15, 5
      %p298 = pnand %p296, %p297
      %p299 = pneg %p298
      // Predicated region
      $region49: #{tpu_custom_call.1} parent=5 // pred_check
        _
      $region50: #{tpu_custom_call.1} parent=5 // pred_check_branch
        %301 = sbr.rel (%p298) target = $region52
      $region51: #{tpu_custom_call.1} parent=5 // pred_region
        %s302 = ssub.s32 %s15, 1
        // Predicated region
        $region53: #{tpu_custom_call.1} parent=51 // pred_check
          %p303 = pneg %p177
        $region54: #{tpu_custom_call.1} parent=51 // pred_check_branch
          %305 = sbr.rel (%p303) target = $region56
        $region55: #{tpu_custom_call.1} parent=51 // pred_region
          %307 = dma.done [#allocation3], 20480
        $region56: #{tpu_custom_call.1} parent=51 // pred_fallthru
          _
        %s308 = smul.u32 8, %s20
        %p309 = scmp.lt.s32.totalorder %s308, 31
        %s310 = scalar_select %p309, %s308, 31
        %s311 = smul.addr %s310, 8
        %s312 = scalar_lea.vmem %s0, %s311
        %p313 = pneg %p41
        %p314 = pneg %p38
        %s315 = smul.u32 8, %s20
        %p316 = scmp.lt.s32.totalorder %s315, 31
        %s317 = scalar_select %p316, %s315, 31
        %s318 = smul.addr %s317, 8
        %s319 = scalar_lea.vmem %s1, %s318
        %p320 = pneg %p67
        %p321 = pneg %p64
        %s322 = smul.u32 8, %s20
        %p323 = scmp.lt.s32.totalorder %s322, 31
        %s324 = scalar_select %p323, %s322, 31
        %s325 = smul.addr %s324, 8
        %s326 = scalar_lea.vmem %s2, %s325
        %p327 = pneg %p93
        %p328 = pneg %p90
        %p329 = pneg %p114
        %p330 = pneg %p111
        %p331 = pneg %p135
        %p332 = pneg %p132
        %p333 = pneg %p156
        %p334 = pneg %p153
        %p335 = pneg %p177
        %p336 = pneg %p174
        %p337 = pneg %p198
        %p338 = pneg %p195
        %p339 = pneg %p224
        %p340 = pneg %p221
        %s341 = smul.u32 8, %s20
        %p342 = scmp.lt.s32.totalorder %s341, 31
        %s343 = scalar_select %p342, %s341, 31
        %s344 = smul.addr %s343, 8
        %s345 = scalar_lea.vmem %s8, %s344
        %s346 = smul.u32 8, %s20
        %p347 = scmp.lt.s32.totalorder %s346, 31
        %s348 = scalar_select %p347, %s346, 31
        %s349 = smul.addr %s348, 8
        %s350 = scalar_lea.vmem %s0, %s349
        %s351 = smul.u32 8, %s20
        %s352 = smul.u32 8, %s20
        %p353 = scmp.lt.s32.totalorder %s352, 31
        %s354 = scalar_select %p353, %s352, 31
        %s355 = smul.addr %s354, 8
        %s356 = scalar_lea.vmem %s1, %s355
        %s357 = smul.u32 8, %s20
        %s358 = smul.u32 8, %s20
        %p359 = scmp.lt.s32.totalorder %s358, 31
        %s360 = scalar_select %p359, %s358, 31
        %s361 = smul.addr %s360, 8
        %s362 = scalar_lea.vmem %s2, %s361
        %s363 = smul.u32 8, %s20
        %s364 = smul.u32 8, %s20
        %p365 = scmp.lt.s32.totalorder %s364, 31
        %s366 = scalar_select %p365, %s364, 31
        %s367 = smul.addr %s366, 8
        %s368 = scalar_lea.vmem %s8, %s367
        %s369 = smul.u32 8, %s20
        %v371 = vld [vmem:[%s350] sm:$0xff]
        %v372 = vld [vmem:[%s350 + $0x8] sm:$0xff]
        %v373 = vld [vmem:[%s350 + $0x10] sm:$0xff]
        %v374 = vld [vmem:[%s350 + $0x18] sm:$0xff]
        %v375 = vld [vmem:[%s350 + $0x20] sm:$0xff]
        %v376 = vld [vmem:[%s350 + $0x28] sm:$0xff]
        %v377 = vld [vmem:[%s350 + $0x30] sm:$0xff]
        %v378 = vld [vmem:[%s350 + $0x38] sm:$0xff]
        %v379 = vpack.c.bf16 %v372, %v371
        %v380 = vpack.c.bf16 %v374, %v373
        %v381 = vpack.c.bf16 %v376, %v375
        %v382 = vpack.c.bf16 %v378, %v377
        %v383 = vld [vmem:[%s3] sm:$0xff]
        %v384 = vld [vmem:[%s3 + $0x8] sm:$0xff]
        %v385 = vld [vmem:[%s3 + $0x10] sm:$0xff]
        %v386 = vld [vmem:[%s3 + $0x18] sm:$0xff]
        %v387 = vld [vmem:[%s3 + $0x20] sm:$0xff]
        %v388 = vld [vmem:[%s3 + $0x28] sm:$0xff]
        %v389 = vld [vmem:[%s3 + $0x30] sm:$0xff]
        %v390 = vld [vmem:[%s3 + $0x38] sm:$0xff]
        %v391 = vld [vmem:[%s3 + $0x40] sm:$0xff]
        %v392 = vld [vmem:[%s3 + $0x48] sm:$0xff]
        %v393 = vld [vmem:[%s3 + $0x50] sm:$0xff]
        %v394 = vld [vmem:[%s3 + $0x58] sm:$0xff]
        %v395 = vld [vmem:[%s3 + $0x60] sm:$0x33]
        %v396 = vld [vmem:[%s356] sm:$0xff]
        %v397 = vld [vmem:[%s356 + $0x8] sm:$0xff]
        %v398 = vld [vmem:[%s356 + $0x10] sm:$0xff]
        %v399 = vld [vmem:[%s356 + $0x18] sm:$0xff]
        %v400 = vld [vmem:[%s356 + $0x20] sm:$0xff]
        %v401 = vld [vmem:[%s356 + $0x28] sm:$0xff]
        %v402 = vld [vmem:[%s356 + $0x30] sm:$0xff]
        %v403 = vld [vmem:[%s356 + $0x38] sm:$0xff]
        %v404 = vpack.c.bf16 %v397, %v396
        %v405 = vpack.c.bf16 %v399, %v398
        %v406 = vpack.c.bf16 %v401, %v400
        %v407 = vpack.c.bf16 %v403, %v402
        %v408 = vld [vmem:[%s4] sm:$0xff]
        %v409 = vld [vmem:[%s4 + $0x8] sm:$0xff]
        %v410 = vld [vmem:[%s4 + $0x10] sm:$0xff]
        %v411 = vld [vmem:[%s4 + $0x18] sm:$0xff]
        %v412 = vld [vmem:[%s4 + $0x20] sm:$0xff]
        %v413 = vld [vmem:[%s4 + $0x28] sm:$0xff]
        %v414 = vld [vmem:[%s4 + $0x30] sm:$0xff]
        %v415 = vld [vmem:[%s4 + $0x38] sm:$0xff]
        %v416 = vld [vmem:[%s4 + $0x40] sm:$0xff]
        %v417 = vld [vmem:[%s4 + $0x48] sm:$0xff]
        %v418 = vld [vmem:[%s4 + $0x50] sm:$0xff]
        %v419 = vld [vmem:[%s4 + $0x58] sm:$0xff]
        %v420 = vld [vmem:[%s4 + $0x60] sm:$0x33]
        %v434 = vunpack.c.l.b16 %v408
        %v435 = vunpack.c.h.b16 %v408
        %v436 = vunpack.c.l.b16 %v409
        %v437 = vunpack.c.h.b16 %v409
        %v438 = vunpack.c.l.b16 %v410
        %v439 = vunpack.c.h.b16 %v410
        %v440 = vunpack.c.l.b16 %v411
        %v441 = vunpack.c.h.b16 %v411
        %v442 = vunpack.c.l.b16 %v412
        %v443 = vunpack.c.h.b16 %v412
        %v444 = vunpack.c.l.b16 %v413
        %v445 = vunpack.c.h.b16 %v413
        %v446 = vunpack.c.l.b16 %v414
        %v447 = vunpack.c.h.b16 %v414
        %v448 = vunpack.c.l.b16 %v415
        %v449 = vunpack.c.h.b16 %v415
        %v450 = vunpack.c.l.b16 %v416
        %v451 = vunpack.c.h.b16 %v416
        %v452 = vunpack.c.l.b16 %v417
        %v453 = vunpack.c.h.b16 %v417
        %v454 = vunpack.c.l.b16 %v418
        %v455 = vunpack.c.h.b16 %v418
        %v456 = vunpack.c.l.b16 %v419
        %v457 = vunpack.c.h.b16 %v419
        %v458 = vunpack.c.l.b16 %v420
        %v459 = vunpack.c.h.b16 %v420
        %v460 = vpack.c.b16 %v436, %v434
        %v461 = vpack.c.b16 %v437, %v435
        %v462 = vpack.c.b16 %v440, %v438
        %v463 = vpack.c.b16 %v441, %v439
        %v464 = vpack.c.b16 %v444, %v442
        %v465 = vpack.c.b16 %v445, %v443
        %v466 = vpack.c.b16 %v448, %v446
        %v467 = vpack.c.b16 %v449, %v447
        %v468 = vpack.c.b16 %v452, %v450
        %v469 = vpack.c.b16 %v453, %v451
        %v470 = vpack.c.b16 %v456, %v454
        %v471 = vpack.c.b16 %v457, %v455
        %v472 = vpack.c.b16 %v458, %v458
        %v473 = vpack.c.b16 %v459, %v459
        %vm486 = vcmask 818176
        %v488 = vsel %vm486, %v404, 0
        %v491 = vsel %vm486, %v405, 0
        %v494 = vsel %vm486, %v406, 0
        %v497 = vsel %vm486, %v407, 0
        %vm499 = vcmask 1041408
        %v501 = vsel %vm499, %v472, 0
        %v504 = vsel %vm499, %v473, 0
        %506 = vmatpush.bf16.msra.mxu0 0
        %507 = vmatpush.bf16.msra.mxu0 %v501
        %508 = vmatpush.bf16.msra.mxu0 %v470
        %509 = vmatpush.bf16.msra.mxu0 %v468
        %510 = vmatpush.bf16.msra.mxu0 %v466
        %511 = vmatpush.bf16.msra.mxu0 %v464
        %512 = vmatpush.bf16.msra.mxu0 %v462
        %513 = vmatpush.bf16.msra.mxu0 %v460
        %514 = vmatmul.bf16.gmra.mxu0 %v488
        %v515 = vpop.f32.mrf.mxu0
        %v516 = vadd.f32 0.0, %v515
        %v517 = vpop.f32.mrf.mxu0
        %v518 = vadd.f32 0.0, %v517
        %519 = vmatmul.bf16.gmra.mxu0 %v491
        %v520 = vpop.f32.mrf.mxu0
        %v521 = vadd.f32 0.0, %v520
        %v522 = vpop.f32.mrf.mxu0
        %v523 = vadd.f32 0.0, %v522
        %524 = vmatmul.bf16.gmra.mxu0 %v494
        %v525 = vpop.f32.mrf.mxu0
        %v526 = vadd.f32 0.0, %v525
        %v527 = vpop.f32.mrf.mxu0
        %v528 = vadd.f32 0.0, %v527
        %529 = vmatmul.bf16.gmra.mxu0 %v497
        %v530 = vpop.f32.mrf.mxu0
        %v531 = vadd.f32 0.0, %v530
        %v532 = vpop.f32.mrf.mxu0
        %v533 = vadd.f32 0.0, %v532
        %534 = vdwg.mxu0
        %535 = vmatpush.bf16.msra.mxu0 0
        %536 = vmatpush.bf16.msra.mxu0 %v504
        %537 = vmatpush.bf16.msra.mxu0 %v471
        %538 = vmatpush.bf16.msra.mxu0 %v469
        %539 = vmatpush.bf16.msra.mxu0 %v467
        %540 = vmatpush.bf16.msra.mxu0 %v465
        %541 = vmatpush.bf16.msra.mxu0 %v463
        %542 = vmatpush.bf16.msra.mxu0 %v461
        %543 = vmatmul.bf16.gmra.mxu0 %v488
        %v544 = vpop.f32.mrf.mxu0
        %v545 = vadd.f32 0.0, %v544
        %v546 = vpop.f32.mrf.mxu0
        %v547 = vadd.f32 0.0, %v546
        %548 = vmatmul.bf16.gmra.mxu0 %v491
        %v549 = vpop.f32.mrf.mxu0
        %v550 = vadd.f32 0.0, %v549
        %v551 = vpop.f32.mrf.mxu0
        %v552 = vadd.f32 0.0, %v551
        %553 = vmatmul.bf16.gmra.mxu0 %v494
        %v554 = vpop.f32.mrf.mxu0
        %v555 = vadd.f32 0.0, %v554
        %v556 = vpop.f32.mrf.mxu0
        %v557 = vadd.f32 0.0, %v556
        %558 = vmatmul.bf16.gmra.mxu0 %v497
        %v559 = vpop.f32.mrf.mxu0
        %v560 = vadd.f32 0.0, %v559
        %v561 = vpop.f32.mrf.mxu0
        %v562 = vadd.f32 0.0, %v561
        %563 = vdwg.mxu0
        %v577 = vunpack.c.l.b16 %v383
        %v578 = vunpack.c.h.b16 %v383
        %v579 = vunpack.c.l.b16 %v384
        %v580 = vunpack.c.h.b16 %v384
        %v581 = vunpack.c.l.b16 %v385
        %v582 = vunpack.c.h.b16 %v385
        %v583 = vunpack.c.l.b16 %v386
        %v584 = vunpack.c.h.b16 %v386
        %v585 = vunpack.c.l.b16 %v387
        %v586 = vunpack.c.h.b16 %v387
        %v587 = vunpack.c.l.b16 %v388
        %v588 = vunpack.c.h.b16 %v388
        %v589 = vunpack.c.l.b16 %v389
        %v590 = vunpack.c.h.b16 %v389
        %v591 = vunpack.c.l.b16 %v390
        %v592 = vunpack.c.h.b16 %v390
        %v593 = vunpack.c.l.b16 %v391
        %v594 = vunpack.c.h.b16 %v391
        %v595 = vunpack.c.l.b16 %v392
        %v596 = vunpack.c.h.b16 %v392
        %v597 = vunpack.c.l.b16 %v393
        %v598 = vunpack.c.h.b16 %v393
        %v599 = vunpack.c.l.b16 %v394
        %v600 = vunpack.c.h.b16 %v394
        %v601 = vunpack.c.l.b16 %v395
        %v602 = vunpack.c.h.b16 %v395
        %v603 = vpack.c.b16 %v579, %v577
        %v604 = vpack.c.b16 %v580, %v578
        %v605 = vpack.c.b16 %v583, %v581
        %v606 = vpack.c.b16 %v584, %v582
        %v607 = vpack.c.b16 %v587, %v585
        %v608 = vpack.c.b16 %v588, %v586
        %v609 = vpack.c.b16 %v591, %v589
        %v610 = vpack.c.b16 %v592, %v590
        %v611 = vpack.c.b16 %v595, %v593
        %v612 = vpack.c.b16 %v596, %v594
        %v613 = vpack.c.b16 %v599, %v597
        %v614 = vpack.c.b16 %v600, %v598
        %v615 = vpack.c.b16 %v601, %v601
        %v616 = vpack.c.b16 %v602, %v602
        %v630 = vsel %vm486, %v379, 0
        %v633 = vsel %vm486, %v380, 0
        %v636 = vsel %vm486, %v381, 0
        %v639 = vsel %vm486, %v382, 0
        %v642 = vsel %vm499, %v615, 0
        %v645 = vsel %vm499, %v616, 0
        %647 = vmatpush.bf16.msra.mxu0 0
        %648 = vmatpush.bf16.msra.mxu0 %v642
        %649 = vmatpush.bf16.msra.mxu0 %v613
        %650 = vmatpush.bf16.msra.mxu0 %v611
        %651 = vmatpush.bf16.msra.mxu0 %v609
        %652 = vmatpush.bf16.msra.mxu0 %v607
        %653 = vmatpush.bf16.msra.mxu0 %v605
        %654 = vmatpush.bf16.msra.mxu0 %v603
        %655 = vmatmul.bf16.gmra.mxu0 %v630
        %v656 = vpop.f32.mrf.mxu0
        %v657 = vadd.f32 %v516, %v656
        %v658 = vpop.f32.mrf.mxu0
        %v659 = vadd.f32 %v518, %v658
        %660 = vmatmul.bf16.gmra.mxu0 %v633
        %v661 = vpop.f32.mrf.mxu0
        %v662 = vadd.f32 %v521, %v661
        %v663 = vpop.f32.mrf.mxu0
        %v664 = vadd.f32 %v523, %v663
        %665 = vmatmul.bf16.gmra.mxu0 %v636
        %v666 = vpop.f32.mrf.mxu0
        %v667 = vadd.f32 %v526, %v666
        %v668 = vpop.f32.mrf.mxu0
        %v669 = vadd.f32 %v528, %v668
        %670 = vmatmul.bf16.gmra.mxu0 %v639
        %v671 = vpop.f32.mrf.mxu0
        %v672 = vadd.f32 %v531, %v671
        %v673 = vpop.f32.mrf.mxu0
        %v674 = vadd.f32 %v533, %v673
        %675 = vdwg.mxu0
        %676 = vmatpush.bf16.msra.mxu0 0
        %677 = vmatpush.bf16.msra.mxu0 %v645
        %678 = vmatpush.bf16.msra.mxu0 %v614
        %679 = vmatpush.bf16.msra.mxu0 %v612
        %680 = vmatpush.bf16.msra.mxu0 %v610
        %681 = vmatpush.bf16.msra.mxu0 %v608
        %682 = vmatpush.bf16.msra.mxu0 %v606
        %683 = vmatpush.bf16.msra.mxu0 %v604
        %684 = vmatmul.bf16.gmra.mxu0 %v630
        %v685 = vpop.f32.mrf.mxu0
        %v686 = vadd.f32 %v545, %v685
        %v687 = vpop.f32.mrf.mxu0
        %v688 = vadd.f32 %v547, %v687
        %689 = vmatmul.bf16.gmra.mxu0 %v633
        %v690 = vpop.f32.mrf.mxu0
        %v691 = vadd.f32 %v550, %v690
        %v692 = vpop.f32.mrf.mxu0
        %v693 = vadd.f32 %v552, %v692
        %694 = vmatmul.bf16.gmra.mxu0 %v636
        %v695 = vpop.f32.mrf.mxu0
        %v696 = vadd.f32 %v555, %v695
        %v697 = vpop.f32.mrf.mxu0
        %v698 = vadd.f32 %v557, %v697
        %699 = vmatmul.bf16.gmra.mxu0 %v639
        %v700 = vpop.f32.mrf.mxu0
        %v701 = vadd.f32 %v560, %v700
        %v702 = vpop.f32.mrf.mxu0
        %v703 = vadd.f32 %v562, %v702
        %704 = vdwg.mxu0
        %v705 = vld [vmem:[%s362] sm:$0xff]
        %v706 = vld [vmem:[%s362 + $0x8] sm:$0xff]
        %v707 = vld [vmem:[%s362 + $0x10] sm:$0xff]
        %v708 = vld [vmem:[%s362 + $0x18] sm:$0xff]
        %v709 = vld [vmem:[%s362 + $0x20] sm:$0xff]
        %v710 = vld [vmem:[%s362 + $0x28] sm:$0xff]
        %v711 = vld [vmem:[%s362 + $0x30] sm:$0xff]
        %v712 = vld [vmem:[%s362 + $0x38] sm:$0xff]
        %v713 = vpack.c.bf16 %v706, %v705
        %v714 = vpack.c.bf16 %v708, %v707
        %v715 = vpack.c.bf16 %v710, %v709
        %v716 = vpack.c.bf16 %v712, %v711
        %v717 = vld [vmem:[%s5] sm:$0xff]
        %v719 = vunpack.c.l.b16 %v717
        %v720 = vunpack.c.h.b16 %v717
        %v721 = vpack.c.b16 %v719, %v719
        %v722 = vpack.c.b16 %v720, %v720
        %vm723 = vcmask 64512
        %v725 = vsel %vm723, %v713, 0
        %v728 = vsel %vm723, %v714, 0
        %v731 = vsel %vm723, %v715, 0
        %v734 = vsel %vm723, %v716, 0
        %vm736 = vcmask 1043456
        %v738 = vsel %vm736, %v721, 0
        %v741 = vsel %vm736, %v722, 0
        %743 = vmatpush.bf16.msra.mxu0 0
        %744 = vmatpush.bf16.msra.mxu0 0
        %745 = vmatpush.bf16.msra.mxu0 0
        %746 = vmatpush.bf16.msra.mxu0 0
        %747 = vmatpush.bf16.msra.mxu0 0
        %748 = vmatpush.bf16.msra.mxu0 0
        %749 = vmatpush.bf16.msra.mxu0 0
        %750 = vmatpush.bf16.msra.mxu0 %v738
        %751 = vmatmul.bf16.gmra.mxu0 %v725
        %v752 = vpop.f32.mrf.mxu0
        %v753 = vadd.f32 0.0, %v752
        %v754 = vpop.f32.mrf.mxu0
        %v755 = vadd.f32 0.0, %v754
        %756 = vmatmul.bf16.gmra.mxu0 %v728
        %v757 = vpop.f32.mrf.mxu0
        %v758 = vadd.f32 0.0, %v757
        %v759 = vpop.f32.mrf.mxu0
        %v760 = vadd.f32 0.0, %v759
        %761 = vmatmul.bf16.gmra.mxu0 %v731
        %v762 = vpop.f32.mrf.mxu0
        %v763 = vadd.f32 0.0, %v762
        %v764 = vpop.f32.mrf.mxu0
        %v765 = vadd.f32 0.0, %v764
        %766 = vmatmul.bf16.gmra.mxu0 %v734
        %v767 = vpop.f32.mrf.mxu0
        %v768 = vadd.f32 0.0, %v767
        %v769 = vpop.f32.mrf.mxu0
        %v770 = vadd.f32 0.0, %v769
        %771 = vdwg.mxu0
        %772 = vmatpush.bf16.msra.mxu0 0
        %773 = vmatpush.bf16.msra.mxu0 0
        %774 = vmatpush.bf16.msra.mxu0 0
        %775 = vmatpush.bf16.msra.mxu0 0
        %776 = vmatpush.bf16.msra.mxu0 0
        %777 = vmatpush.bf16.msra.mxu0 0
        %778 = vmatpush.bf16.msra.mxu0 0
        %779 = vmatpush.bf16.msra.mxu0 %v741
        %780 = vmatmul.bf16.gmra.mxu0 %v725
        %v781 = vpop.f32.mrf.mxu0
        %v782 = vadd.f32 0.0, %v781
        %v783 = vpop.f32.mrf.mxu0
        %v784 = vadd.f32 0.0, %v783
        %785 = vmatmul.bf16.gmra.mxu0 %v728
        %v786 = vpop.f32.mrf.mxu0
        %v787 = vadd.f32 0.0, %v786
        %v788 = vpop.f32.mrf.mxu0
        %v789 = vadd.f32 0.0, %v788
        %790 = vmatmul.bf16.gmra.mxu0 %v731
        %v791 = vpop.f32.mrf.mxu0
        %v792 = vadd.f32 0.0, %v791
        %v793 = vpop.f32.mrf.mxu0
        %v794 = vadd.f32 0.0, %v793
        %795 = vmatmul.bf16.gmra.mxu0 %v734
        %v796 = vpop.f32.mrf.mxu0
        %v797 = vadd.f32 0.0, %v796
        %v798 = vpop.f32.mrf.mxu0
        %v799 = vadd.f32 0.0, %v798
        %800 = vdwg.mxu0
        %v801 = vadd.f32 %v657, %v753
        %v802 = vadd.f32 %v686, %v782
        %v803 = vadd.f32 %v659, %v755
        %v804 = vadd.f32 %v688, %v784
        %v805 = vadd.f32 %v662, %v758
        %v806 = vadd.f32 %v691, %v787
        %v807 = vadd.f32 %v664, %v760
        %v808 = vadd.f32 %v693, %v789
        %v809 = vadd.f32 %v667, %v763
        %v810 = vadd.f32 %v696, %v792
        %v811 = vadd.f32 %v669, %v765
        %v812 = vadd.f32 %v698, %v794
        %v813 = vadd.f32 %v672, %v768
        %v814 = vadd.f32 %v701, %v797
        %v815 = vadd.f32 %v674, %v770
        %v816 = vadd.f32 %v703, %v799
        %v817 = vld [vmem:[%s7] sm:$0x3]
        %v819 = vperm.slane %v817, 0
        %v820 = vperm.slane %v817, 1
        %v823 = vadd.f32 %v801, %v819
        %v824 = vadd.f32 %v802, %v820
        %v825 = vadd.f32 %v803, %v819
        %v826 = vadd.f32 %v804, %v820
        %v827 = vadd.f32 %v805, %v819
        %v828 = vadd.f32 %v806, %v820
        %v829 = vadd.f32 %v807, %v819
        %v830 = vadd.f32 %v808, %v820
        %v831 = vadd.f32 %v809, %v819
        %v832 = vadd.f32 %v810, %v820
        %v833 = vadd.f32 %v811, %v819
        %v834 = vadd.f32 %v812, %v820
        %v835 = vadd.f32 %v813, %v819
        %v836 = vadd.f32 %v814, %v820
        %v837 = vadd.f32 %v815, %v819
        %v838 = vadd.f32 %v816, %v820
        %v839 = vtanh.pop %v823
        %v840 = vtanh.pop %v824
        %v841 = vtanh.pop %v825
        %v842 = vtanh.pop %v826
        %v843 = vtanh.pop %v827
        %v844 = vtanh.pop %v828
        %v845 = vtanh.pop %v829
        %v846 = vtanh.pop %v830
        %v847 = vtanh.pop %v831
        %v848 = vtanh.pop %v832
        %v849 = vtanh.pop %v833
        %v850 = vtanh.pop %v834
        %v851 = vtanh.pop %v835
        %v852 = vtanh.pop %v836
        %v853 = vtanh.pop %v837
        %v854 = vtanh.pop %v838
        %v855 = vpack.c.bf16 %v841, %v839
        %v856 = vpack.c.bf16 %v842, %v840
        %v857 = vpack.c.bf16 %v845, %v843
        %v858 = vpack.c.bf16 %v846, %v844
        %v859 = vpack.c.bf16 %v849, %v847
        %v860 = vpack.c.bf16 %v850, %v848
        %v861 = vpack.c.bf16 %v853, %v851
        %v862 = vpack.c.bf16 %v854, %v852
        %v863 = vld [vmem:[#allocation2] sm:$0xff]
        %v864 = vld [vmem:[#allocation2 + $0x8] sm:$0xff]
        %v865 = vld [vmem:[#allocation2 + $0x10] sm:$0xff]
        %v866 = vld [vmem:[#allocation2 + $0x18] sm:$0xff]
        %v867 = vld [vmem:[#allocation2 + $0x20] sm:$0xff]
        %v868 = vld [vmem:[#allocation2 + $0x28] sm:$0xff]
        %v869 = vld [vmem:[#allocation2 + $0x30] sm:$0xff]
        %v870 = vld [vmem:[#allocation2 + $0x38] sm:$0xff]
        %v871 = vld [vmem:[#allocation2 + $0x40] sm:$0xff]
        %v872 = vld [vmem:[#allocation2 + $0x48] sm:$0xff]
        %v873 = vld [vmem:[#allocation2 + $0x50] sm:$0xff]
        %v874 = vld [vmem:[#allocation2 + $0x58] sm:$0xff]
        %v875 = vld [vmem:[#allocation2 + $0x60] sm:$0xff]
        %v876 = vld [vmem:[#allocation2 + $0x68] sm:$0xff]
        %v877 = vld [vmem:[#allocation2 + $0x70] sm:$0xff]
        %v878 = vld [vmem:[#allocation2 + $0x78] sm:$0xff]
        %v879 = vld [vmem:[#allocation2 + $0x80] sm:$0xff]
        %v880 = vld [vmem:[#allocation2 + $0x88] sm:$0xff]
        %v881 = vld [vmem:[#allocation2 + $0x90] sm:$0xff]
        %v882 = vld [vmem:[#allocation2 + $0x98] sm:$0xff]
        %v883 = vld [vmem:[#allocation2 + $0xa0] sm:$0xff]
        %v884 = vld [vmem:[#allocation2 + $0xa8] sm:$0xff]
        %v885 = vld [vmem:[#allocation2 + $0xb0] sm:$0xff]
        %v886 = vld [vmem:[#allocation2 + $0xb8] sm:$0xff]
        %v887 = vld [vmem:[#allocation2 + $0xc0] sm:$0xff]
        %v888 = vld [vmem:[#allocation2 + $0xc8] sm:$0xff]
        %v889 = vld [vmem:[#allocation2 + $0xd0] sm:$0xff]
        %v890 = vld [vmem:[#allocation2 + $0xd8] sm:$0xff]
        %v891 = vld [vmem:[#allocation2 + $0xe0] sm:$0xff]
        %v892 = vld [vmem:[#allocation2 + $0xe8] sm:$0xff]
        %v893 = vld [vmem:[#allocation2 + $0xf0] sm:$0xff]
        %v894 = vld [vmem:[#allocation2 + $0xf8] sm:$0xff]
        %s895 = scalar_lea.vmem %s7, 2
        %v896 = vld [vmem:[%s895] sm:$0x3]
        %v898 = vperm.slane %v896, 0
        %v899 = vperm.slane %v896, 1
        %v934 = vunpack.c.l.b16 %v863
        %v935 = vunpack.c.h.b16 %v863
        %v936 = vunpack.c.l.b16 %v864
        %v937 = vunpack.c.h.b16 %v864
        %v938 = vunpack.c.l.b16 %v865
        %v939 = vunpack.c.h.b16 %v865
        %v940 = vunpack.c.l.b16 %v866
        %v941 = vunpack.c.h.b16 %v866
        %v942 = vunpack.c.l.b16 %v867
        %v943 = vunpack.c.h.b16 %v867
        %v944 = vunpack.c.l.b16 %v868
        %v945 = vunpack.c.h.b16 %v868
        %v946 = vunpack.c.l.b16 %v869
        %v947 = vunpack.c.h.b16 %v869
        %v948 = vunpack.c.l.b16 %v870
        %v949 = vunpack.c.h.b16 %v870
        %v950 = vunpack.c.l.b16 %v871
        %v951 = vunpack.c.h.b16 %v871
        %v952 = vunpack.c.l.b16 %v872
        %v953 = vunpack.c.h.b16 %v872
        %v954 = vunpack.c.l.b16 %v873
        %v955 = vunpack.c.h.b16 %v873
        %v956 = vunpack.c.l.b16 %v874
        %v957 = vunpack.c.h.b16 %v874
        %v958 = vunpack.c.l.b16 %v875
        %v959 = vunpack.c.h.b16 %v875
        %v960 = vunpack.c.l.b16 %v876
        %v961 = vunpack.c.h.b16 %v876
        %v962 = vunpack.c.l.b16 %v877
        %v963 = vunpack.c.h.b16 %v877
        %v964 = vunpack.c.l.b16 %v878
        %v965 = vunpack.c.h.b16 %v878
        %v966 = vunpack.c.l.b16 %v879
        %v967 = vunpack.c.h.b16 %v879
        %v968 = vunpack.c.l.b16 %v880
        %v969 = vunpack.c.h.b16 %v880
        %v970 = vunpack.c.l.b16 %v881
        %v971 = vunpack.c.h.b16 %v881
        %v972 = vunpack.c.l.b16 %v882
        %v973 = vunpack.c.h.b16 %v882
        %v974 = vunpack.c.l.b16 %v883
        %v975 = vunpack.c.h.b16 %v883
        %v976 = vunpack.c.l.b16 %v884
        %v977 = vunpack.c.h.b16 %v884
        %v978 = vunpack.c.l.b16 %v885
        %v979 = vunpack.c.h.b16 %v885
        %v980 = vunpack.c.l.b16 %v886
        %v981 = vunpack.c.h.b16 %v886
        %v982 = vunpack.c.l.b16 %v887
        %v983 = vunpack.c.h.b16 %v887
        %v984 = vunpack.c.l.b16 %v888
        %v985 = vunpack.c.h.b16 %v888
        %v986 = vunpack.c.l.b16 %v889
        %v987 = vunpack.c.h.b16 %v889
        %v988 = vunpack.c.l.b16 %v890
        %v989 = vunpack.c.h.b16 %v890
        %v990 = vunpack.c.l.b16 %v891
        %v991 = vunpack.c.h.b16 %v891
        %v992 = vunpack.c.l.b16 %v892
        %v993 = vunpack.c.h.b16 %v892
        %v994 = vunpack.c.l.b16 %v893
        %v995 = vunpack.c.h.b16 %v893
        %v996 = vunpack.c.l.b16 %v894
        %v997 = vunpack.c.h.b16 %v894
        %v998 = vpack.c.b16 %v936, %v934
        %v999 = vpack.c.b16 %v937, %v935
        %v1000 = vpack.c.b16 %v940, %v938
        %v1001 = vpack.c.b16 %v941, %v939
        %v1002 = vpack.c.b16 %v944, %v942
        %v1003 = vpack.c.b16 %v945, %v943
        %v1004 = vpack.c.b16 %v948, %v946
        %v1005 = vpack.c.b16 %v949, %v947
        %v1006 = vpack.c.b16 %v952, %v950
        %v1007 = vpack.c.b16 %v953, %v951
        %v1008 = vpack.c.b16 %v956, %v954
        %v1009 = vpack.c.b16 %v957, %v955
        %v1010 = vpack.c.b16 %v960, %v958
        %v1011 = vpack.c.b16 %v961, %v959
        %v1012 = vpack.c.b16 %v964, %v962
        %v1013 = vpack.c.b16 %v965, %v963
        %v1014 = vpack.c.b16 %v968, %v966
        %v1015 = vpack.c.b16 %v969, %v967
        %v1016 = vpack.c.b16 %v972, %v970
        %v1017 = vpack.c.b16 %v973, %v971
        %v1018 = vpack.c.b16 %v976, %v974
        %v1019 = vpack.c.b16 %v977, %v975
        %v1020 = vpack.c.b16 %v980, %v978
        %v1021 = vpack.c.b16 %v981, %v979
        %v1022 = vpack.c.b16 %v984, %v982
        %v1023 = vpack.c.b16 %v985, %v983
        %v1024 = vpack.c.b16 %v988, %v986
        %v1025 = vpack.c.b16 %v989, %v987
        %v1026 = vpack.c.b16 %v992, %v990
        %v1027 = vpack.c.b16 %v993, %v991
        %v1028 = vpack.c.b16 %v996, %v994
        %v1029 = vpack.c.b16 %v997, %v995
        %1062 = vmatpush.bf16.msra.mxu0 %v1012
        %1063 = vmatpush.bf16.msra.mxu0 %v1010
        %1064 = vmatpush.bf16.msra.mxu0 %v1008
        %1065 = vmatpush.bf16.msra.mxu0 %v1006
        %1066 = vmatpush.bf16.msra.mxu0 %v1004
        %1067 = vmatpush.bf16.msra.mxu0 %v1002
        %1068 = vmatpush.bf16.msra.mxu0 %v1000
        %1069 = vmatpush.bf16.msra.mxu0 %v998
        %1070 = vmatmul.bf16.gmra.mxu0 %v855
        %v1071 = vpop.f32.mrf.mxu0
        %v1072 = vadd.f32 %v898, %v1071
        %v1073 = vpop.f32.mrf.mxu0
        %v1074 = vadd.f32 %v898, %v1073
        %1075 = vmatmul.bf16.gmra.mxu0 %v857
        %v1076 = vpop.f32.mrf.mxu0
        %v1077 = vadd.f32 %v898, %v1076
        %v1078 = vpop.f32.mrf.mxu0
        %v1079 = vadd.f32 %v898, %v1078
        %1080 = vmatmul.bf16.gmra.mxu0 %v859
        %v1081 = vpop.f32.mrf.mxu0
        %v1082 = vadd.f32 %v898, %v1081
        %v1083 = vpop.f32.mrf.mxu0
        %v1084 = vadd.f32 %v898, %v1083
        %1085 = vmatmul.bf16.gmra.mxu0 %v861
        %v1086 = vpop.f32.mrf.mxu0
        %v1087 = vadd.f32 %v898, %v1086
        %v1088 = vpop.f32.mrf.mxu0
        %v1089 = vadd.f32 %v898, %v1088
        %1090 = vdwg.mxu0
        %1091 = vmatpush.bf16.msra.mxu0 %v1028
        %1092 = vmatpush.bf16.msra.mxu0 %v1026
        %1093 = vmatpush.bf16.msra.mxu0 %v1024
        %1094 = vmatpush.bf16.msra.mxu0 %v1022
        %1095 = vmatpush.bf16.msra.mxu0 %v1020
        %1096 = vmatpush.bf16.msra.mxu0 %v1018
        %1097 = vmatpush.bf16.msra.mxu0 %v1016
        %1098 = vmatpush.bf16.msra.mxu0 %v1014
        %1099 = vmatmul.bf16.gmra.mxu0 %v856
        %v1100 = vpop.f32.mrf.mxu0
        %v1101 = vadd.f32 %v1072, %v1100
        %v1102 = vpop.f32.mrf.mxu0
        %v1103 = vadd.f32 %v1074, %v1102
        %1104 = vmatmul.bf16.gmra.mxu0 %v858
        %v1105 = vpop.f32.mrf.mxu0
        %v1106 = vadd.f32 %v1077, %v1105
        %v1107 = vpop.f32.mrf.mxu0
        %v1108 = vadd.f32 %v1079, %v1107
        %1109 = vmatmul.bf16.gmra.mxu0 %v860
        %v1110 = vpop.f32.mrf.mxu0
        %v1111 = vadd.f32 %v1082, %v1110
        %v1112 = vpop.f32.mrf.mxu0
        %v1113 = vadd.f32 %v1084, %v1112
        %1114 = vmatmul.bf16.gmra.mxu0 %v862
        %v1115 = vpop.f32.mrf.mxu0
        %v1116 = vadd.f32 %v1087, %v1115
        %v1117 = vpop.f32.mrf.mxu0
        %v1118 = vadd.f32 %v1089, %v1117
        %1119 = vdwg.mxu0
        %1120 = vmatpush.bf16.msra.mxu0 %v1013
        %1121 = vmatpush.bf16.msra.mxu0 %v1011
        %1122 = vmatpush.bf16.msra.mxu0 %v1009
        %1123 = vmatpush.bf16.msra.mxu0 %v1007
        %1124 = vmatpush.bf16.msra.mxu0 %v1005
        %1125 = vmatpush.bf16.msra.mxu0 %v1003
        %1126 = vmatpush.bf16.msra.mxu0 %v1001
        %1127 = vmatpush.bf16.msra.mxu0 %v999
        %1128 = vmatmul.bf16.gmra.mxu0 %v855
        %v1129 = vpop.f32.mrf.mxu0
        %v1130 = vadd.f32 %v899, %v1129
        %v1131 = vpop.f32.mrf.mxu0
        %v1132 = vadd.f32 %v899, %v1131
        %1133 = vmatmul.bf16.gmra.mxu0 %v857
        %v1134 = vpop.f32.mrf.mxu0
        %v1135 = vadd.f32 %v899, %v1134
        %v1136 = vpop.f32.mrf.mxu0
        %v1137 = vadd.f32 %v899, %v1136
        %1138 = vmatmul.bf16.gmra.mxu0 %v859
        %v1139 = vpop.f32.mrf.mxu0
        %v1140 = vadd.f32 %v899, %v1139
        %v1141 = vpop.f32.mrf.mxu0
        %v1142 = vadd.f32 %v899, %v1141
        %1143 = vmatmul.bf16.gmra.mxu0 %v861
        %v1144 = vpop.f32.mrf.mxu0
        %v1145 = vadd.f32 %v899, %v1144
        %v1146 = vpop.f32.mrf.mxu0
        %v1147 = vadd.f32 %v899, %v1146
        %1148 = vdwg.mxu0
        %1149 = vmatpush.bf16.msra.mxu0 %v1029
        %1150 = vmatpush.bf16.msra.mxu0 %v1027
        %1151 = vmatpush.bf16.msra.mxu0 %v1025
        %1152 = vmatpush.bf16.msra.mxu0 %v1023
        %1153 = vmatpush.bf16.msra.mxu0 %v1021
        %1154 = vmatpush.bf16.msra.mxu0 %v1019
        %1155 = vmatpush.bf16.msra.mxu0 %v1017
        %1156 = vmatpush.bf16.msra.mxu0 %v1015
        %1157 = vmatmul.bf16.gmra.mxu0 %v856
        %v1158 = vpop.f32.mrf.mxu0
        %v1159 = vadd.f32 %v1130, %v1158
        %v1160 = vpop.f32.mrf.mxu0
        %v1161 = vadd.f32 %v1132, %v1160
        %1162 = vmatmul.bf16.gmra.mxu0 %v858
        %v1163 = vpop.f32.mrf.mxu0
        %v1164 = vadd.f32 %v1135, %v1163
        %v1165 = vpop.f32.mrf.mxu0
        %v1166 = vadd.f32 %v1137, %v1165
        %1167 = vmatmul.bf16.gmra.mxu0 %v860
        %v1168 = vpop.f32.mrf.mxu0
        %v1169 = vadd.f32 %v1140, %v1168
        %v1170 = vpop.f32.mrf.mxu0
        %v1171 = vadd.f32 %v1142, %v1170
        %1172 = vmatmul.bf16.gmra.mxu0 %v862
        %v1173 = vpop.f32.mrf.mxu0
        %v1174 = vadd.f32 %v1145, %v1173
        %v1175 = vpop.f32.mrf.mxu0
        %v1176 = vadd.f32 %v1147, %v1175
        %1177 = vdwg.mxu0
        %v1178 = vtanh.pop %v1101
        %v1179 = vtanh.pop %v1159
        %v1180 = vtanh.pop %v1103
        %v1181 = vtanh.pop %v1161
        %v1182 = vtanh.pop %v1106
        %v1183 = vtanh.pop %v1164
        %v1184 = vtanh.pop %v1108
        %v1185 = vtanh.pop %v1166
        %v1186 = vtanh.pop %v1111
        %v1187 = vtanh.pop %v1169
        %v1188 = vtanh.pop %v1113
        %v1189 = vtanh.pop %v1171
        %v1190 = vtanh.pop %v1116
        %v1191 = vtanh.pop %v1174
        %v1192 = vtanh.pop %v1118
        %v1193 = vtanh.pop %v1176
        %v1194 = vpack.c.bf16 %v1180, %v1178
        %v1195 = vpack.c.bf16 %v1181, %v1179
        %v1196 = vpack.c.bf16 %v1184, %v1182
        %v1197 = vpack.c.bf16 %v1185, %v1183
        %v1198 = vpack.c.bf16 %v1188, %v1186
        %v1199 = vpack.c.bf16 %v1189, %v1187
        %v1200 = vpack.c.bf16 %v1192, %v1190
        %v1201 = vpack.c.bf16 %v1193, %v1191
        %s1202 = scalar_lea.vmem [#allocation2], 256
        %v1203 = vld [vmem:[%s1202] sm:$0xff]
        %v1204 = vld [vmem:[%s1202 + $0x8] sm:$0xff]
        %v1205 = vld [vmem:[%s1202 + $0x10] sm:$0xff]
        %v1206 = vld [vmem:[%s1202 + $0x18] sm:$0xff]
        %v1207 = vld [vmem:[%s1202 + $0x20] sm:$0xff]
        %v1208 = vld [vmem:[%s1202 + $0x28] sm:$0xff]
        %v1209 = vld [vmem:[%s1202 + $0x30] sm:$0xff]
        %v1210 = vld [vmem:[%s1202 + $0x38] sm:$0xff]
        %v1211 = vld [vmem:[%s1202 + $0x40] sm:$0xff]
        %v1212 = vld [vmem:[%s1202 + $0x48] sm:$0xff]
        %v1213 = vld [vmem:[%s1202 + $0x50] sm:$0xff]
        %v1214 = vld [vmem:[%s1202 + $0x58] sm:$0xff]
        %v1215 = vld [vmem:[%s1202 + $0x60] sm:$0xff]
        %v1216 = vld [vmem:[%s1202 + $0x68] sm:$0xff]
        %v1217 = vld [vmem:[%s1202 + $0x70] sm:$0xff]
        %v1218 = vld [vmem:[%s1202 + $0x78] sm:$0xff]
        %v1219 = vld [vmem:[%s1202 + $0x80] sm:$0xff]
        %v1220 = vld [vmem:[%s1202 + $0x88] sm:$0xff]
        %v1221 = vld [vmem:[%s1202 + $0x90] sm:$0xff]
        %v1222 = vld [vmem:[%s1202 + $0x98] sm:$0xff]
        %v1223 = vld [vmem:[%s1202 + $0xa0] sm:$0xff]
        %v1224 = vld [vmem:[%s1202 + $0xa8] sm:$0xff]
        %v1225 = vld [vmem:[%s1202 + $0xb0] sm:$0xff]
        %v1226 = vld [vmem:[%s1202 + $0xb8] sm:$0xff]
        %v1227 = vld [vmem:[%s1202 + $0xc0] sm:$0xff]
        %v1228 = vld [vmem:[%s1202 + $0xc8] sm:$0xff]
        %v1229 = vld [vmem:[%s1202 + $0xd0] sm:$0xff]
        %v1230 = vld [vmem:[%s1202 + $0xd8] sm:$0xff]
        %v1231 = vld [vmem:[%s1202 + $0xe0] sm:$0xff]
        %v1232 = vld [vmem:[%s1202 + $0xe8] sm:$0xff]
        %v1233 = vld [vmem:[%s1202 + $0xf0] sm:$0xff]
        %v1234 = vld [vmem:[%s1202 + $0xf8] sm:$0xff]
        %s1235 = scalar_lea.vmem %s7, 4
        %v1236 = vld [vmem:[%s1235] sm:$0x3]
        %v1238 = vperm.slane %v1236, 0
        %v1239 = vperm.slane %v1236, 1
        %v1274 = vunpack.c.l.b16 %v1203
        %v1275 = vunpack.c.h.b16 %v1203
        %v1276 = vunpack.c.l.b16 %v1204
        %v1277 = vunpack.c.h.b16 %v1204
        %v1278 = vunpack.c.l.b16 %v1205
        %v1279 = vunpack.c.h.b16 %v1205
        %v1280 = vunpack.c.l.b16 %v1206
        %v1281 = vunpack.c.h.b16 %v1206
        %v1282 = vunpack.c.l.b16 %v1207
        %v1283 = vunpack.c.h.b16 %v1207
        %v1284 = vunpack.c.l.b16 %v1208
        %v1285 = vunpack.c.h.b16 %v1208
        %v1286 = vunpack.c.l.b16 %v1209
        %v1287 = vunpack.c.h.b16 %v1209
        %v1288 = vunpack.c.l.b16 %v1210
        %v1289 = vunpack.c.h.b16 %v1210
        %v1290 = vunpack.c.l.b16 %v1211
        %v1291 = vunpack.c.h.b16 %v1211
        %v1292 = vunpack.c.l.b16 %v1212
        %v1293 = vunpack.c.h.b16 %v1212
        %v1294 = vunpack.c.l.b16 %v1213
        %v1295 = vunpack.c.h.b16 %v1213
        %v1296 = vunpack.c.l.b16 %v1214
        %v1297 = vunpack.c.h.b16 %v1214
        %v1298 = vunpack.c.l.b16 %v1215
        %v1299 = vunpack.c.h.b16 %v1215
        %v1300 = vunpack.c.l.b16 %v1216
        %v1301 = vunpack.c.h.b16 %v1216
        %v1302 = vunpack.c.l.b16 %v1217
        %v1303 = vunpack.c.h.b16 %v1217
        %v1304 = vunpack.c.l.b16 %v1218
        %v1305 = vunpack.c.h.b16 %v1218
        %v1306 = vunpack.c.l.b16 %v1219
        %v1307 = vunpack.c.h.b16 %v1219
        %v1308 = vunpack.c.l.b16 %v1220
        %v1309 = vunpack.c.h.b16 %v1220
        %v1310 = vunpack.c.l.b16 %v1221
        %v1311 = vunpack.c.h.b16 %v1221
        %v1312 = vunpack.c.l.b16 %v1222
        %v1313 = vunpack.c.h.b16 %v1222
        %v1314 = vunpack.c.l.b16 %v1223
        %v1315 = vunpack.c.h.b16 %v1223
        %v1316 = vunpack.c.l.b16 %v1224
        %v1317 = vunpack.c.h.b16 %v1224
        %v1318 = vunpack.c.l.b16 %v1225
        %v1319 = vunpack.c.h.b16 %v1225
        %v1320 = vunpack.c.l.b16 %v1226
        %v1321 = vunpack.c.h.b16 %v1226
        %v1322 = vunpack.c.l.b16 %v1227
        %v1323 = vunpack.c.h.b16 %v1227
        %v1324 = vunpack.c.l.b16 %v1228
        %v1325 = vunpack.c.h.b16 %v1228
        %v1326 = vunpack.c.l.b16 %v1229
        %v1327 = vunpack.c.h.b16 %v1229
        %v1328 = vunpack.c.l.b16 %v1230
        %v1329 = vunpack.c.h.b16 %v1230
        %v1330 = vunpack.c.l.b16 %v1231
        %v1331 = vunpack.c.h.b16 %v1231
        %v1332 = vunpack.c.l.b16 %v1232
        %v1333 = vunpack.c.h.b16 %v1232
        %v1334 = vunpack.c.l.b16 %v1233
        %v1335 = vunpack.c.h.b16 %v1233
        %v1336 = vunpack.c.l.b16 %v1234
        %v1337 = vunpack.c.h.b16 %v1234
        %v1338 = vpack.c.b16 %v1276, %v1274
        %v1339 = vpack.c.b16 %v1277, %v1275
        %v1340 = vpack.c.b16 %v1280, %v1278
        %v1341 = vpack.c.b16 %v1281, %v1279
        %v1342 = vpack.c.b16 %v1284, %v1282
        %v1343 = vpack.c.b16 %v1285, %v1283
        %v1344 = vpack.c.b16 %v1288, %v1286
        %v1345 = vpack.c.b16 %v1289, %v1287
        %v1346 = vpack.c.b16 %v1292, %v1290
        %v1347 = vpack.c.b16 %v1293, %v1291
        %v1348 = vpack.c.b16 %v1296, %v1294
        %v1349 = vpack.c.b16 %v1297, %v1295
        %v1350 = vpack.c.b16 %v1300, %v1298
        %v1351 = vpack.c.b16 %v1301, %v1299
        %v1352 = vpack.c.b16 %v1304, %v1302
        %v1353 = vpack.c.b16 %v1305, %v1303
        %v1354 = vpack.c.b16 %v1308, %v1306
        %v1355 = vpack.c.b16 %v1309, %v1307
        %v1356 = vpack.c.b16 %v1312, %v1310
        %v1357 = vpack.c.b16 %v1313, %v1311
        %v1358 = vpack.c.b16 %v1316, %v1314
        %v1359 = vpack.c.b16 %v1317, %v1315
        %v1360 = vpack.c.b16 %v1320, %v1318
        %v1361 = vpack.c.b16 %v1321, %v1319
        %v1362 = vpack.c.b16 %v1324, %v1322
        %v1363 = vpack.c.b16 %v1325, %v1323
        %v1364 = vpack.c.b16 %v1328, %v1326
        %v1365 = vpack.c.b16 %v1329, %v1327
        %v1366 = vpack.c.b16 %v1332, %v1330
        %v1367 = vpack.c.b16 %v1333, %v1331
        %v1368 = vpack.c.b16 %v1336, %v1334
        %v1369 = vpack.c.b16 %v1337, %v1335
        %1402 = vmatpush.bf16.msra.mxu0 %v1352
        %1403 = vmatpush.bf16.msra.mxu0 %v1350
        %1404 = vmatpush.bf16.msra.mxu0 %v1348
        %1405 = vmatpush.bf16.msra.mxu0 %v1346
        %1406 = vmatpush.bf16.msra.mxu0 %v1344
        %1407 = vmatpush.bf16.msra.mxu0 %v1342
        %1408 = vmatpush.bf16.msra.mxu0 %v1340
        %1409 = vmatpush.bf16.msra.mxu0 %v1338
        %1410 = vmatmul.bf16.gmra.mxu0 %v1194
        %v1411 = vpop.f32.mrf.mxu0
        %v1412 = vadd.f32 %v1238, %v1411
        %v1413 = vpop.f32.mrf.mxu0
        %v1414 = vadd.f32 %v1238, %v1413
        %1415 = vmatmul.bf16.gmra.mxu0 %v1196
        %v1416 = vpop.f32.mrf.mxu0
        %v1417 = vadd.f32 %v1238, %v1416
        %v1418 = vpop.f32.mrf.mxu0
        %v1419 = vadd.f32 %v1238, %v1418
        %1420 = vmatmul.bf16.gmra.mxu0 %v1198
        %v1421 = vpop.f32.mrf.mxu0
        %v1422 = vadd.f32 %v1238, %v1421
        %v1423 = vpop.f32.mrf.mxu0
        %v1424 = vadd.f32 %v1238, %v1423
        %1425 = vmatmul.bf16.gmra.mxu0 %v1200
        %v1426 = vpop.f32.mrf.mxu0
        %v1427 = vadd.f32 %v1238, %v1426
        %v1428 = vpop.f32.mrf.mxu0
        %v1429 = vadd.f32 %v1238, %v1428
        %1430 = vdwg.mxu0
        %1431 = vmatpush.bf16.msra.mxu0 %v1368
        %1432 = vmatpush.bf16.msra.mxu0 %v1366
        %1433 = vmatpush.bf16.msra.mxu0 %v1364
        %1434 = vmatpush.bf16.msra.mxu0 %v1362
        %1435 = vmatpush.bf16.msra.mxu0 %v1360
        %1436 = vmatpush.bf16.msra.mxu0 %v1358
        %1437 = vmatpush.bf16.msra.mxu0 %v1356
        %1438 = vmatpush.bf16.msra.mxu0 %v1354
        %1439 = vmatmul.bf16.gmra.mxu0 %v1195
        %v1440 = vpop.f32.mrf.mxu0
        %v1441 = vadd.f32 %v1412, %v1440
        %v1442 = vpop.f32.mrf.mxu0
        %v1443 = vadd.f32 %v1414, %v1442
        %1444 = vmatmul.bf16.gmra.mxu0 %v1197
        %v1445 = vpop.f32.mrf.mxu0
        %v1446 = vadd.f32 %v1417, %v1445
        %v1447 = vpop.f32.mrf.mxu0
        %v1448 = vadd.f32 %v1419, %v1447
        %1449 = vmatmul.bf16.gmra.mxu0 %v1199
        %v1450 = vpop.f32.mrf.mxu0
        %v1451 = vadd.f32 %v1422, %v1450
        %v1452 = vpop.f32.mrf.mxu0
        %v1453 = vadd.f32 %v1424, %v1452
        %1454 = vmatmul.bf16.gmra.mxu0 %v1201
        %v1455 = vpop.f32.mrf.mxu0
        %v1456 = vadd.f32 %v1427, %v1455
        %v1457 = vpop.f32.mrf.mxu0
        %v1458 = vadd.f32 %v1429, %v1457
        %1459 = vdwg.mxu0
        %1460 = vmatpush.bf16.msra.mxu0 %v1353
        %1461 = vmatpush.bf16.msra.mxu0 %v1351
        %1462 = vmatpush.bf16.msra.mxu0 %v1349
        %1463 = vmatpush.bf16.msra.mxu0 %v1347
        %1464 = vmatpush.bf16.msra.mxu0 %v1345
        %1465 = vmatpush.bf16.msra.mxu0 %v1343
        %1466 = vmatpush.bf16.msra.mxu0 %v1341
        %1467 = vmatpush.bf16.msra.mxu0 %v1339
        %1468 = vmatmul.bf16.gmra.mxu0 %v1194
        %v1469 = vpop.f32.mrf.mxu0
        %v1470 = vadd.f32 %v1239, %v1469
        %v1471 = vpop.f32.mrf.mxu0
        %v1472 = vadd.f32 %v1239, %v1471
        %1473 = vmatmul.bf16.gmra.mxu0 %v1196
        %v1474 = vpop.f32.mrf.mxu0
        %v1475 = vadd.f32 %v1239, %v1474
        %v1476 = vpop.f32.mrf.mxu0
        %v1477 = vadd.f32 %v1239, %v1476
        %1478 = vmatmul.bf16.gmra.mxu0 %v1198
        %v1479 = vpop.f32.mrf.mxu0
        %v1480 = vadd.f32 %v1239, %v1479
        %v1481 = vpop.f32.mrf.mxu0
        %v1482 = vadd.f32 %v1239, %v1481
        %1483 = vmatmul.bf16.gmra.mxu0 %v1200
        %v1484 = vpop.f32.mrf.mxu0
        %v1485 = vadd.f32 %v1239, %v1484
        %v1486 = vpop.f32.mrf.mxu0
        %v1487 = vadd.f32 %v1239, %v1486
        %1488 = vdwg.mxu0
        %1489 = vmatpush.bf16.msra.mxu0 %v1369
        %1490 = vmatpush.bf16.msra.mxu0 %v1367
        %1491 = vmatpush.bf16.msra.mxu0 %v1365
        %1492 = vmatpush.bf16.msra.mxu0 %v1363
        %1493 = vmatpush.bf16.msra.mxu0 %v1361
        %1494 = vmatpush.bf16.msra.mxu0 %v1359
        %1495 = vmatpush.bf16.msra.mxu0 %v1357
        %1496 = vmatpush.bf16.msra.mxu0 %v1355
        %1497 = vmatmul.bf16.gmra.mxu0 %v1195
        %v1498 = vpop.f32.mrf.mxu0
        %v1499 = vadd.f32 %v1470, %v1498
        %v1500 = vpop.f32.mrf.mxu0
        %v1501 = vadd.f32 %v1472, %v1500
        %1502 = vmatmul.bf16.gmra.mxu0 %v1197
        %v1503 = vpop.f32.mrf.mxu0
        %v1504 = vadd.f32 %v1475, %v1503
        %v1505 = vpop.f32.mrf.mxu0
        %v1506 = vadd.f32 %v1477, %v1505
        %1507 = vmatmul.bf16.gmra.mxu0 %v1199
        %v1508 = vpop.f32.mrf.mxu0
        %v1509 = vadd.f32 %v1480, %v1508
        %v1510 = vpop.f32.mrf.mxu0
        %v1511 = vadd.f32 %v1482, %v1510
        %1512 = vmatmul.bf16.gmra.mxu0 %v1201
        %v1513 = vpop.f32.mrf.mxu0
        %v1514 = vadd.f32 %v1485, %v1513
        %v1515 = vpop.f32.mrf.mxu0
        %v1516 = vadd.f32 %v1487, %v1515
        %1517 = vdwg.mxu0
        %v1518 = vtanh.pop %v1441
        %v1519 = vtanh.pop %v1499
        %v1520 = vtanh.pop %v1443
        %v1521 = vtanh.pop %v1501
        %v1522 = vtanh.pop %v1446
        %v1523 = vtanh.pop %v1504
        %v1524 = vtanh.pop %v1448
        %v1525 = vtanh.pop %v1506
        %v1526 = vtanh.pop %v1451
        %v1527 = vtanh.pop %v1509
        %v1528 = vtanh.pop %v1453
        %v1529 = vtanh.pop %v1511
        %v1530 = vtanh.pop %v1456
        %v1531 = vtanh.pop %v1514
        %v1532 = vtanh.pop %v1458
        %v1533 = vtanh.pop %v1516
        %v1534 = vpack.c.bf16 %v1520, %v1518
        %v1535 = vpack.c.bf16 %v1521, %v1519
        %v1536 = vpack.c.bf16 %v1524, %v1522
        %v1537 = vpack.c.bf16 %v1525, %v1523
        %v1538 = vpack.c.bf16 %v1528, %v1526
        %v1539 = vpack.c.bf16 %v1529, %v1527
        %v1540 = vpack.c.bf16 %v1532, %v1530
        %v1541 = vpack.c.bf16 %v1533, %v1531
        %s1542 = scalar_lea.vmem [#allocation2], 512
        %v1543 = vld [vmem:[%s1542] sm:$0xff]
        %v1544 = vld [vmem:[%s1542 + $0x8] sm:$0xff]
        %v1545 = vld [vmem:[%s1542 + $0x10] sm:$0xff]
        %v1546 = vld [vmem:[%s1542 + $0x18] sm:$0xff]
        %v1547 = vld [vmem:[%s1542 + $0x20] sm:$0xff]
        %v1548 = vld [vmem:[%s1542 + $0x28] sm:$0xff]
        %v1549 = vld [vmem:[%s1542 + $0x30] sm:$0xff]
        %v1550 = vld [vmem:[%s1542 + $0x38] sm:$0xff]
        %v1551 = vld [vmem:[%s1542 + $0x40] sm:$0xff]
        %v1552 = vld [vmem:[%s1542 + $0x48] sm:$0xff]
        %v1553 = vld [vmem:[%s1542 + $0x50] sm:$0xff]
        %v1554 = vld [vmem:[%s1542 + $0x58] sm:$0xff]
        %v1555 = vld [vmem:[%s1542 + $0x60] sm:$0xff]
        %v1556 = vld [vmem:[%s1542 + $0x68] sm:$0xff]
        %v1557 = vld [vmem:[%s1542 + $0x70] sm:$0xff]
        %v1558 = vld [vmem:[%s1542 + $0x78] sm:$0xff]
        %v1559 = vld [vmem:[%s1542 + $0x80] sm:$0xff]
        %v1560 = vld [vmem:[%s1542 + $0x88] sm:$0xff]
        %v1561 = vld [vmem:[%s1542 + $0x90] sm:$0xff]
        %v1562 = vld [vmem:[%s1542 + $0x98] sm:$0xff]
        %v1563 = vld [vmem:[%s1542 + $0xa0] sm:$0xff]
        %v1564 = vld [vmem:[%s1542 + $0xa8] sm:$0xff]
        %v1565 = vld [vmem:[%s1542 + $0xb0] sm:$0xff]
        %v1566 = vld [vmem:[%s1542 + $0xb8] sm:$0xff]
        %v1567 = vld [vmem:[%s1542 + $0xc0] sm:$0xff]
        %v1568 = vld [vmem:[%s1542 + $0xc8] sm:$0xff]
        %v1569 = vld [vmem:[%s1542 + $0xd0] sm:$0xff]
        %v1570 = vld [vmem:[%s1542 + $0xd8] sm:$0xff]
        %v1571 = vld [vmem:[%s1542 + $0xe0] sm:$0xff]
        %v1572 = vld [vmem:[%s1542 + $0xe8] sm:$0xff]
        %v1573 = vld [vmem:[%s1542 + $0xf0] sm:$0xff]
        %v1574 = vld [vmem:[%s1542 + $0xf8] sm:$0xff]
        %s1575 = scalar_lea.vmem %s7, 6
        %v1576 = vld [vmem:[%s1575] sm:$0x3]
        %v1578 = vperm.slane %v1576, 0
        %v1579 = vperm.slane %v1576, 1
        %v1614 = vunpack.c.l.b16 %v1543
        %v1615 = vunpack.c.h.b16 %v1543
        %v1616 = vunpack.c.l.b16 %v1544
        %v1617 = vunpack.c.h.b16 %v1544
        %v1618 = vunpack.c.l.b16 %v1545
        %v1619 = vunpack.c.h.b16 %v1545
        %v1620 = vunpack.c.l.b16 %v1546
        %v1621 = vunpack.c.h.b16 %v1546
        %v1622 = vunpack.c.l.b16 %v1547
        %v1623 = vunpack.c.h.b16 %v1547
        %v1624 = vunpack.c.l.b16 %v1548
        %v1625 = vunpack.c.h.b16 %v1548
        %v1626 = vunpack.c.l.b16 %v1549
        %v1627 = vunpack.c.h.b16 %v1549
        %v1628 = vunpack.c.l.b16 %v1550
        %v1629 = vunpack.c.h.b16 %v1550
        %v1630 = vunpack.c.l.b16 %v1551
        %v1631 = vunpack.c.h.b16 %v1551
        %v1632 = vunpack.c.l.b16 %v1552
        %v1633 = vunpack.c.h.b16 %v1552
        %v1634 = vunpack.c.l.b16 %v1553
        %v1635 = vunpack.c.h.b16 %v1553
        %v1636 = vunpack.c.l.b16 %v1554
        %v1637 = vunpack.c.h.b16 %v1554
        %v1638 = vunpack.c.l.b16 %v1555
        %v1639 = vunpack.c.h.b16 %v1555
        %v1640 = vunpack.c.l.b16 %v1556
        %v1641 = vunpack.c.h.b16 %v1556
        %v1642 = vunpack.c.l.b16 %v1557
        %v1643 = vunpack.c.h.b16 %v1557
        %v1644 = vunpack.c.l.b16 %v1558
        %v1645 = vunpack.c.h.b16 %v1558
        %v1646 = vunpack.c.l.b16 %v1559
        %v1647 = vunpack.c.h.b16 %v1559
        %v1648 = vunpack.c.l.b16 %v1560
        %v1649 = vunpack.c.h.b16 %v1560
        %v1650 = vunpack.c.l.b16 %v1561
        %v1651 = vunpack.c.h.b16 %v1561
        %v1652 = vunpack.c.l.b16 %v1562
        %v1653 = vunpack.c.h.b16 %v1562
        %v1654 = vunpack.c.l.b16 %v1563
        %v1655 = vunpack.c.h.b16 %v1563
        %v1656 = vunpack.c.l.b16 %v1564
        %v1657 = vunpack.c.h.b16 %v1564
        %v1658 = vunpack.c.l.b16 %v1565
        %v1659 = vunpack.c.h.b16 %v1565
        %v1660 = vunpack.c.l.b16 %v1566
        %v1661 = vunpack.c.h.b16 %v1566
        %v1662 = vunpack.c.l.b16 %v1567
        %v1663 = vunpack.c.h.b16 %v1567
        %v1664 = vunpack.c.l.b16 %v1568
        %v1665 = vunpack.c.h.b16 %v1568
        %v1666 = vunpack.c.l.b16 %v1569
        %v1667 = vunpack.c.h.b16 %v1569
        %v1668 = vunpack.c.l.b16 %v1570
        %v1669 = vunpack.c.h.b16 %v1570
        %v1670 = vunpack.c.l.b16 %v1571
        %v1671 = vunpack.c.h.b16 %v1571
        %v1672 = vunpack.c.l.b16 %v1572
        %v1673 = vunpack.c.h.b16 %v1572
        %v1674 = vunpack.c.l.b16 %v1573
        %v1675 = vunpack.c.h.b16 %v1573
        %v1676 = vunpack.c.l.b16 %v1574
        %v1677 = vunpack.c.h.b16 %v1574
        %v1678 = vpack.c.b16 %v1616, %v1614
        %v1679 = vpack.c.b16 %v1617, %v1615
        %v1680 = vpack.c.b16 %v1620, %v1618
        %v1681 = vpack.c.b16 %v1621, %v1619
        %v1682 = vpack.c.b16 %v1624, %v1622
        %v1683 = vpack.c.b16 %v1625, %v1623
        %v1684 = vpack.c.b16 %v1628, %v1626
        %v1685 = vpack.c.b16 %v1629, %v1627
        %v1686 = vpack.c.b16 %v1632, %v1630
        %v1687 = vpack.c.b16 %v1633, %v1631
        %v1688 = vpack.c.b16 %v1636, %v1634
        %v1689 = vpack.c.b16 %v1637, %v1635
        %v1690 = vpack.c.b16 %v1640, %v1638
        %v1691 = vpack.c.b16 %v1641, %v1639
        %v1692 = vpack.c.b16 %v1644, %v1642
        %v1693 = vpack.c.b16 %v1645, %v1643
        %v1694 = vpack.c.b16 %v1648, %v1646
        %v1695 = vpack.c.b16 %v1649, %v1647
        %v1696 = vpack.c.b16 %v1652, %v1650
        %v1697 = vpack.c.b16 %v1653, %v1651
        %v1698 = vpack.c.b16 %v1656, %v1654
        %v1699 = vpack.c.b16 %v1657, %v1655
        %v1700 = vpack.c.b16 %v1660, %v1658
        %v1701 = vpack.c.b16 %v1661, %v1659
        %v1702 = vpack.c.b16 %v1664, %v1662
        %v1703 = vpack.c.b16 %v1665, %v1663
        %v1704 = vpack.c.b16 %v1668, %v1666
        %v1705 = vpack.c.b16 %v1669, %v1667
        %v1706 = vpack.c.b16 %v1672, %v1670
        %v1707 = vpack.c.b16 %v1673, %v1671
        %v1708 = vpack.c.b16 %v1676, %v1674
        %v1709 = vpack.c.b16 %v1677, %v1675
        %1742 = vmatpush.bf16.msra.mxu0 %v1692
        %1743 = vmatpush.bf16.msra.mxu0 %v1690
        %1744 = vmatpush.bf16.msra.mxu0 %v1688
        %1745 = vmatpush.bf16.msra.mxu0 %v1686
        %1746 = vmatpush.bf16.msra.mxu0 %v1684
        %1747 = vmatpush.bf16.msra.mxu0 %v1682
        %1748 = vmatpush.bf16.msra.mxu0 %v1680
        %1749 = vmatpush.bf16.msra.mxu0 %v1678
        %1750 = vmatmul.bf16.gmra.mxu0 %v1534
        %v1751 = vpop.f32.mrf.mxu0
        %v1752 = vadd.f32 %v1578, %v1751
        %v1753 = vpop.f32.mrf.mxu0
        %v1754 = vadd.f32 %v1578, %v1753
        %1755 = vmatmul.bf16.gmra.mxu0 %v1536
        %v1756 = vpop.f32.mrf.mxu0
        %v1757 = vadd.f32 %v1578, %v1756
        %v1758 = vpop.f32.mrf.mxu0
        %v1759 = vadd.f32 %v1578, %v1758
        %1760 = vmatmul.bf16.gmra.mxu0 %v1538
        %v1761 = vpop.f32.mrf.mxu0
        %v1762 = vadd.f32 %v1578, %v1761
        %v1763 = vpop.f32.mrf.mxu0
        %v1764 = vadd.f32 %v1578, %v1763
        %1765 = vmatmul.bf16.gmra.mxu0 %v1540
        %v1766 = vpop.f32.mrf.mxu0
        %v1767 = vadd.f32 %v1578, %v1766
        %v1768 = vpop.f32.mrf.mxu0
        %v1769 = vadd.f32 %v1578, %v1768
        %1770 = vdwg.mxu0
        %1771 = vmatpush.bf16.msra.mxu0 %v1708
        %1772 = vmatpush.bf16.msra.mxu0 %v1706
        %1773 = vmatpush.bf16.msra.mxu0 %v1704
        %1774 = vmatpush.bf16.msra.mxu0 %v1702
        %1775 = vmatpush.bf16.msra.mxu0 %v1700
        %1776 = vmatpush.bf16.msra.mxu0 %v1698
        %1777 = vmatpush.bf16.msra.mxu0 %v1696
        %1778 = vmatpush.bf16.msra.mxu0 %v1694
        %1779 = vmatmul.bf16.gmra.mxu0 %v1535
        %v1780 = vpop.f32.mrf.mxu0
        %v1781 = vadd.f32 %v1752, %v1780
        %v1782 = vpop.f32.mrf.mxu0
        %v1783 = vadd.f32 %v1754, %v1782
        %1784 = vmatmul.bf16.gmra.mxu0 %v1537
        %v1785 = vpop.f32.mrf.mxu0
        %v1786 = vadd.f32 %v1757, %v1785
        %v1787 = vpop.f32.mrf.mxu0
        %v1788 = vadd.f32 %v1759, %v1787
        %1789 = vmatmul.bf16.gmra.mxu0 %v1539
        %v1790 = vpop.f32.mrf.mxu0
        %v1791 = vadd.f32 %v1762, %v1790
        %v1792 = vpop.f32.mrf.mxu0
        %v1793 = vadd.f32 %v1764, %v1792
        %1794 = vmatmul.bf16.gmra.mxu0 %v1541
        %v1795 = vpop.f32.mrf.mxu0
        %v1796 = vadd.f32 %v1767, %v1795
        %v1797 = vpop.f32.mrf.mxu0
        %v1798 = vadd.f32 %v1769, %v1797
        %1799 = vdwg.mxu0
        %1800 = vmatpush.bf16.msra.mxu0 %v1693
        %1801 = vmatpush.bf16.msra.mxu0 %v1691
        %1802 = vmatpush.bf16.msra.mxu0 %v1689
        %1803 = vmatpush.bf16.msra.mxu0 %v1687
        %1804 = vmatpush.bf16.msra.mxu0 %v1685
        %1805 = vmatpush.bf16.msra.mxu0 %v1683
        %1806 = vmatpush.bf16.msra.mxu0 %v1681
        %1807 = vmatpush.bf16.msra.mxu0 %v1679
        %1808 = vmatmul.bf16.gmra.mxu0 %v1534
        %v1809 = vpop.f32.mrf.mxu0
        %v1810 = vadd.f32 %v1579, %v1809
        %v1811 = vpop.f32.mrf.mxu0
        %v1812 = vadd.f32 %v1579, %v1811
        %1813 = vmatmul.bf16.gmra.mxu0 %v1536
        %v1814 = vpop.f32.mrf.mxu0
        %v1815 = vadd.f32 %v1579, %v1814
        %v1816 = vpop.f32.mrf.mxu0
        %v1817 = vadd.f32 %v1579, %v1816
        %1818 = vmatmul.bf16.gmra.mxu0 %v1538
        %v1819 = vpop.f32.mrf.mxu0
        %v1820 = vadd.f32 %v1579, %v1819
        %v1821 = vpop.f32.mrf.mxu0
        %v1822 = vadd.f32 %v1579, %v1821
        %1823 = vmatmul.bf16.gmra.mxu0 %v1540
        %v1824 = vpop.f32.mrf.mxu0
        %v1825 = vadd.f32 %v1579, %v1824
        %v1826 = vpop.f32.mrf.mxu0
        %v1827 = vadd.f32 %v1579, %v1826
        %1828 = vdwg.mxu0
        %1829 = vmatpush.bf16.msra.mxu0 %v1709
        %1830 = vmatpush.bf16.msra.mxu0 %v1707
        %1831 = vmatpush.bf16.msra.mxu0 %v1705
        %1832 = vmatpush.bf16.msra.mxu0 %v1703
        %1833 = vmatpush.bf16.msra.mxu0 %v1701
        %1834 = vmatpush.bf16.msra.mxu0 %v1699
        %1835 = vmatpush.bf16.msra.mxu0 %v1697
        %1836 = vmatpush.bf16.msra.mxu0 %v1695
        %1837 = vmatmul.bf16.gmra.mxu0 %v1535
        %v1838 = vpop.f32.mrf.mxu0
        %v1839 = vadd.f32 %v1810, %v1838
        %v1840 = vpop.f32.mrf.mxu0
        %v1841 = vadd.f32 %v1812, %v1840
        %1842 = vmatmul.bf16.gmra.mxu0 %v1537
        %v1843 = vpop.f32.mrf.mxu0
        %v1844 = vadd.f32 %v1815, %v1843
        %v1845 = vpop.f32.mrf.mxu0
        %v1846 = vadd.f32 %v1817, %v1845
        %1847 = vmatmul.bf16.gmra.mxu0 %v1539
        %v1848 = vpop.f32.mrf.mxu0
        %v1849 = vadd.f32 %v1820, %v1848
        %v1850 = vpop.f32.mrf.mxu0
        %v1851 = vadd.f32 %v1822, %v1850
        %1852 = vmatmul.bf16.gmra.mxu0 %v1541
        %v1853 = vpop.f32.mrf.mxu0
        %v1854 = vadd.f32 %v1825, %v1853
        %v1855 = vpop.f32.mrf.mxu0
        %v1856 = vadd.f32 %v1827, %v1855
        %1857 = vdwg.mxu0
        %v1858 = vtanh.pop %v1781
        %v1859 = vtanh.pop %v1839
        %v1860 = vtanh.pop %v1783
        %v1861 = vtanh.pop %v1841
        %v1862 = vtanh.pop %v1786
        %v1863 = vtanh.pop %v1844
        %v1864 = vtanh.pop %v1788
        %v1865 = vtanh.pop %v1846
        %v1866 = vtanh.pop %v1791
        %v1867 = vtanh.pop %v1849
        %v1868 = vtanh.pop %v1793
        %v1869 = vtanh.pop %v1851
        %v1870 = vtanh.pop %v1796
        %v1871 = vtanh.pop %v1854
        %v1872 = vtanh.pop %v1798
        %v1873 = vtanh.pop %v1856
        %v1874 = vpack.c.bf16 %v1860, %v1858
        %v1875 = vpack.c.bf16 %v1861, %v1859
        %v1876 = vpack.c.bf16 %v1864, %v1862
        %v1877 = vpack.c.bf16 %v1865, %v1863
        %v1878 = vpack.c.bf16 %v1868, %v1866
        %v1879 = vpack.c.bf16 %v1869, %v1867
        %v1880 = vpack.c.bf16 %v1872, %v1870
        %v1881 = vpack.c.bf16 %v1873, %v1871
        %s1882 = scalar_lea.vmem [#allocation2], 768
        %v1883 = vld [vmem:[%s1882] sm:$0xff]
        %v1884 = vld [vmem:[%s1882 + $0x8] sm:$0xff]
        %v1885 = vld [vmem:[%s1882 + $0x10] sm:$0xff]
        %v1886 = vld [vmem:[%s1882 + $0x18] sm:$0xff]
        %v1887 = vld [vmem:[%s1882 + $0x20] sm:$0xff]
        %v1888 = vld [vmem:[%s1882 + $0x28] sm:$0xff]
        %v1889 = vld [vmem:[%s1882 + $0x30] sm:$0xff]
        %v1890 = vld [vmem:[%s1882 + $0x38] sm:$0xff]
        %v1891 = vld [vmem:[%s1882 + $0x40] sm:$0xff]
        %v1892 = vld [vmem:[%s1882 + $0x48] sm:$0xff]
        %v1893 = vld [vmem:[%s1882 + $0x50] sm:$0xff]
        %v1894 = vld [vmem:[%s1882 + $0x58] sm:$0xff]
        %v1895 = vld [vmem:[%s1882 + $0x60] sm:$0xff]
        %v1896 = vld [vmem:[%s1882 + $0x68] sm:$0xff]
        %v1897 = vld [vmem:[%s1882 + $0x70] sm:$0xff]
        %v1898 = vld [vmem:[%s1882 + $0x78] sm:$0xff]
        %v1899 = vld [vmem:[%s1882 + $0x80] sm:$0xff]
        %v1900 = vld [vmem:[%s1882 + $0x88] sm:$0xff]
        %v1901 = vld [vmem:[%s1882 + $0x90] sm:$0xff]
        %v1902 = vld [vmem:[%s1882 + $0x98] sm:$0xff]
        %v1903 = vld [vmem:[%s1882 + $0xa0] sm:$0xff]
        %v1904 = vld [vmem:[%s1882 + $0xa8] sm:$0xff]
        %v1905 = vld [vmem:[%s1882 + $0xb0] sm:$0xff]
        %v1906 = vld [vmem:[%s1882 + $0xb8] sm:$0xff]
        %v1907 = vld [vmem:[%s1882 + $0xc0] sm:$0xff]
        %v1908 = vld [vmem:[%s1882 + $0xc8] sm:$0xff]
        %v1909 = vld [vmem:[%s1882 + $0xd0] sm:$0xff]
        %v1910 = vld [vmem:[%s1882 + $0xd8] sm:$0xff]
        %v1911 = vld [vmem:[%s1882 + $0xe0] sm:$0xff]
        %v1912 = vld [vmem:[%s1882 + $0xe8] sm:$0xff]
        %v1913 = vld [vmem:[%s1882 + $0xf0] sm:$0xff]
        %v1914 = vld [vmem:[%s1882 + $0xf8] sm:$0xff]
        %s1915 = scalar_lea.vmem %s7, 8
        %v1916 = vld [vmem:[%s1915] sm:$0x3]
        %v1918 = vperm.slane %v1916, 0
        %v1919 = vperm.slane %v1916, 1
        %v1954 = vunpack.c.l.b16 %v1883
        %v1955 = vunpack.c.h.b16 %v1883
        %v1956 = vunpack.c.l.b16 %v1884
        %v1957 = vunpack.c.h.b16 %v1884
        %v1958 = vunpack.c.l.b16 %v1885
        %v1959 = vunpack.c.h.b16 %v1885
        %v1960 = vunpack.c.l.b16 %v1886
        %v1961 = vunpack.c.h.b16 %v1886
        %v1962 = vunpack.c.l.b16 %v1887
        %v1963 = vunpack.c.h.b16 %v1887
        %v1964 = vunpack.c.l.b16 %v1888
        %v1965 = vunpack.c.h.b16 %v1888
        %v1966 = vunpack.c.l.b16 %v1889
        %v1967 = vunpack.c.h.b16 %v1889
        %v1968 = vunpack.c.l.b16 %v1890
        %v1969 = vunpack.c.h.b16 %v1890
        %v1970 = vunpack.c.l.b16 %v1891
        %v1971 = vunpack.c.h.b16 %v1891
        %v1972 = vunpack.c.l.b16 %v1892
        %v1973 = vunpack.c.h.b16 %v1892
        %v1974 = vunpack.c.l.b16 %v1893
        %v1975 = vunpack.c.h.b16 %v1893
        %v1976 = vunpack.c.l.b16 %v1894
        %v1977 = vunpack.c.h.b16 %v1894
        %v1978 = vunpack.c.l.b16 %v1895
        %v1979 = vunpack.c.h.b16 %v1895
        %v1980 = vunpack.c.l.b16 %v1896
        %v1981 = vunpack.c.h.b16 %v1896
        %v1982 = vunpack.c.l.b16 %v1897
        %v1983 = vunpack.c.h.b16 %v1897
        %v1984 = vunpack.c.l.b16 %v1898
        %v1985 = vunpack.c.h.b16 %v1898
        %v1986 = vunpack.c.l.b16 %v1899
        %v1987 = vunpack.c.h.b16 %v1899
        %v1988 = vunpack.c.l.b16 %v1900
        %v1989 = vunpack.c.h.b16 %v1900
        %v1990 = vunpack.c.l.b16 %v1901
        %v1991 = vunpack.c.h.b16 %v1901
        %v1992 = vunpack.c.l.b16 %v1902
        %v1993 = vunpack.c.h.b16 %v1902
        %v1994 = vunpack.c.l.b16 %v1903
        %v1995 = vunpack.c.h.b16 %v1903
        %v1996 = vunpack.c.l.b16 %v1904
        %v1997 = vunpack.c.h.b16 %v1904
        %v1998 = vunpack.c.l.b16 %v1905
        %v1999 = vunpack.c.h.b16 %v1905
        %v2000 = vunpack.c.l.b16 %v1906
        %v2001 = vunpack.c.h.b16 %v1906
        %v2002 = vunpack.c.l.b16 %v1907
        %v2003 = vunpack.c.h.b16 %v1907
        %v2004 = vunpack.c.l.b16 %v1908
        %v2005 = vunpack.c.h.b16 %v1908
        %v2006 = vunpack.c.l.b16 %v1909
        %v2007 = vunpack.c.h.b16 %v1909
        %v2008 = vunpack.c.l.b16 %v1910
        %v2009 = vunpack.c.h.b16 %v1910
        %v2010 = vunpack.c.l.b16 %v1911
        %v2011 = vunpack.c.h.b16 %v1911
        %v2012 = vunpack.c.l.b16 %v1912
        %v2013 = vunpack.c.h.b16 %v1912
        %v2014 = vunpack.c.l.b16 %v1913
        %v2015 = vunpack.c.h.b16 %v1913
        %v2016 = vunpack.c.l.b16 %v1914
        %v2017 = vunpack.c.h.b16 %v1914
        %v2018 = vpack.c.b16 %v1956, %v1954
        %v2019 = vpack.c.b16 %v1957, %v1955
        %v2020 = vpack.c.b16 %v1960, %v1958
        %v2021 = vpack.c.b16 %v1961, %v1959
        %v2022 = vpack.c.b16 %v1964, %v1962
        %v2023 = vpack.c.b16 %v1965, %v1963
        %v2024 = vpack.c.b16 %v1968, %v1966
        %v2025 = vpack.c.b16 %v1969, %v1967
        %v2026 = vpack.c.b16 %v1972, %v1970
        %v2027 = vpack.c.b16 %v1973, %v1971
        %v2028 = vpack.c.b16 %v1976, %v1974
        %v2029 = vpack.c.b16 %v1977, %v1975
        %v2030 = vpack.c.b16 %v1980, %v1978
        %v2031 = vpack.c.b16 %v1981, %v1979
        %v2032 = vpack.c.b16 %v1984, %v1982
        %v2033 = vpack.c.b16 %v1985, %v1983
        %v2034 = vpack.c.b16 %v1988, %v1986
        %v2035 = vpack.c.b16 %v1989, %v1987
        %v2036 = vpack.c.b16 %v1992, %v1990
        %v2037 = vpack.c.b16 %v1993, %v1991
        %v2038 = vpack.c.b16 %v1996, %v1994
        %v2039 = vpack.c.b16 %v1997, %v1995
        %v2040 = vpack.c.b16 %v2000, %v1998
        %v2041 = vpack.c.b16 %v2001, %v1999
        %v2042 = vpack.c.b16 %v2004, %v2002
        %v2043 = vpack.c.b16 %v2005, %v2003
        %v2044 = vpack.c.b16 %v2008, %v2006
        %v2045 = vpack.c.b16 %v2009, %v2007
        %v2046 = vpack.c.b16 %v2012, %v2010
        %v2047 = vpack.c.b16 %v2013, %v2011
        %v2048 = vpack.c.b16 %v2016, %v2014
        %v2049 = vpack.c.b16 %v2017, %v2015
        %2082 = vmatpush.bf16.msra.mxu0 %v2032
        %2083 = vmatpush.bf16.msra.mxu0 %v2030
        %2084 = vmatpush.bf16.msra.mxu0 %v2028
        %2085 = vmatpush.bf16.msra.mxu0 %v2026
        %2086 = vmatpush.bf16.msra.mxu0 %v2024
        %2087 = vmatpush.bf16.msra.mxu0 %v2022
        %2088 = vmatpush.bf16.msra.mxu0 %v2020
        %2089 = vmatpush.bf16.msra.mxu0 %v2018
        %2090 = vmatmul.bf16.gmra.mxu0 %v1874
        %v2091 = vpop.f32.mrf.mxu0
        %v2092 = vadd.f32 %v1918, %v2091
        %v2093 = vpop.f32.mrf.mxu0
        %v2094 = vadd.f32 %v1918, %v2093
        %2095 = vmatmul.bf16.gmra.mxu0 %v1876
        %v2096 = vpop.f32.mrf.mxu0
        %v2097 = vadd.f32 %v1918, %v2096
        %v2098 = vpop.f32.mrf.mxu0
        %v2099 = vadd.f32 %v1918, %v2098
        %2100 = vmatmul.bf16.gmra.mxu0 %v1878
        %v2101 = vpop.f32.mrf.mxu0
        %v2102 = vadd.f32 %v1918, %v2101
        %v2103 = vpop.f32.mrf.mxu0
        %v2104 = vadd.f32 %v1918, %v2103
        %2105 = vmatmul.bf16.gmra.mxu0 %v1880
        %v2106 = vpop.f32.mrf.mxu0
        %v2107 = vadd.f32 %v1918, %v2106
        %v2108 = vpop.f32.mrf.mxu0
        %v2109 = vadd.f32 %v1918, %v2108
        %2110 = vdwg.mxu0
        %2111 = vmatpush.bf16.msra.mxu0 %v2048
        %2112 = vmatpush.bf16.msra.mxu0 %v2046
        %2113 = vmatpush.bf16.msra.mxu0 %v2044
        %2114 = vmatpush.bf16.msra.mxu0 %v2042
        %2115 = vmatpush.bf16.msra.mxu0 %v2040
        %2116 = vmatpush.bf16.msra.mxu0 %v2038
        %2117 = vmatpush.bf16.msra.mxu0 %v2036
        %2118 = vmatpush.bf16.msra.mxu0 %v2034
        %2119 = vmatmul.bf16.gmra.mxu0 %v1875
        %v2120 = vpop.f32.mrf.mxu0
        %v2121 = vadd.f32 %v2092, %v2120
        %v2122 = vpop.f32.mrf.mxu0
        %v2123 = vadd.f32 %v2094, %v2122
        %2124 = vmatmul.bf16.gmra.mxu0 %v1877
        %v2125 = vpop.f32.mrf.mxu0
        %v2126 = vadd.f32 %v2097, %v2125
        %v2127 = vpop.f32.mrf.mxu0
        %v2128 = vadd.f32 %v2099, %v2127
        %2129 = vmatmul.bf16.gmra.mxu0 %v1879
        %v2130 = vpop.f32.mrf.mxu0
        %v2131 = vadd.f32 %v2102, %v2130
        %v2132 = vpop.f32.mrf.mxu0
        %v2133 = vadd.f32 %v2104, %v2132
        %2134 = vmatmul.bf16.gmra.mxu0 %v1881
        %v2135 = vpop.f32.mrf.mxu0
        %v2136 = vadd.f32 %v2107, %v2135
        %v2137 = vpop.f32.mrf.mxu0
        %v2138 = vadd.f32 %v2109, %v2137
        %2139 = vdwg.mxu0
        %2140 = vmatpush.bf16.msra.mxu0 %v2033
        %2141 = vmatpush.bf16.msra.mxu0 %v2031
        %2142 = vmatpush.bf16.msra.mxu0 %v2029
        %2143 = vmatpush.bf16.msra.mxu0 %v2027
        %2144 = vmatpush.bf16.msra.mxu0 %v2025
        %2145 = vmatpush.bf16.msra.mxu0 %v2023
        %2146 = vmatpush.bf16.msra.mxu0 %v2021
        %2147 = vmatpush.bf16.msra.mxu0 %v2019
        %2148 = vmatmul.bf16.gmra.mxu0 %v1874
        %v2149 = vpop.f32.mrf.mxu0
        %v2150 = vadd.f32 %v1919, %v2149
        %v2151 = vpop.f32.mrf.mxu0
        %v2152 = vadd.f32 %v1919, %v2151
        %2153 = vmatmul.bf16.gmra.mxu0 %v1876
        %v2154 = vpop.f32.mrf.mxu0
        %v2155 = vadd.f32 %v1919, %v2154
        %v2156 = vpop.f32.mrf.mxu0
        %v2157 = vadd.f32 %v1919, %v2156
        %2158 = vmatmul.bf16.gmra.mxu0 %v1878
        %v2159 = vpop.f32.mrf.mxu0
        %v2160 = vadd.f32 %v1919, %v2159
        %v2161 = vpop.f32.mrf.mxu0
        %v2162 = vadd.f32 %v1919, %v2161
        %2163 = vmatmul.bf16.gmra.mxu0 %v1880
        %v2164 = vpop.f32.mrf.mxu0
        %v2165 = vadd.f32 %v1919, %v2164
        %v2166 = vpop.f32.mrf.mxu0
        %v2167 = vadd.f32 %v1919, %v2166
        %2168 = vdwg.mxu0
        %2169 = vmatpush.bf16.msra.mxu0 %v2049
        %2170 = vmatpush.bf16.msra.mxu0 %v2047
        %2171 = vmatpush.bf16.msra.mxu0 %v2045
        %2172 = vmatpush.bf16.msra.mxu0 %v2043
        %2173 = vmatpush.bf16.msra.mxu0 %v2041
        %2174 = vmatpush.bf16.msra.mxu0 %v2039
        %2175 = vmatpush.bf16.msra.mxu0 %v2037
        %2176 = vmatpush.bf16.msra.mxu0 %v2035
        %2177 = vmatmul.bf16.gmra.mxu0 %v1875
        %v2178 = vpop.f32.mrf.mxu0
        %v2179 = vadd.f32 %v2150, %v2178
        %v2180 = vpop.f32.mrf.mxu0
        %v2181 = vadd.f32 %v2152, %v2180
        %2182 = vmatmul.bf16.gmra.mxu0 %v1877
        %v2183 = vpop.f32.mrf.mxu0
        %v2184 = vadd.f32 %v2155, %v2183
        %v2185 = vpop.f32.mrf.mxu0
        %v2186 = vadd.f32 %v2157, %v2185
        %2187 = vmatmul.bf16.gmra.mxu0 %v1879
        %v2188 = vpop.f32.mrf.mxu0
        %v2189 = vadd.f32 %v2160, %v2188
        %v2190 = vpop.f32.mrf.mxu0
        %v2191 = vadd.f32 %v2162, %v2190
        %2192 = vmatmul.bf16.gmra.mxu0 %v1881
        %v2193 = vpop.f32.mrf.mxu0
        %v2194 = vadd.f32 %v2165, %v2193
        %v2195 = vpop.f32.mrf.mxu0
        %v2196 = vadd.f32 %v2167, %v2195
        %2197 = vdwg.mxu0
        %v2198 = vtanh.pop %v2121
        %v2199 = vtanh.pop %v2179
        %v2200 = vtanh.pop %v2123
        %v2201 = vtanh.pop %v2181
        %v2202 = vtanh.pop %v2126
        %v2203 = vtanh.pop %v2184
        %v2204 = vtanh.pop %v2128
        %v2205 = vtanh.pop %v2186
        %v2206 = vtanh.pop %v2131
        %v2207 = vtanh.pop %v2189
        %v2208 = vtanh.pop %v2133
        %v2209 = vtanh.pop %v2191
        %v2210 = vtanh.pop %v2136
        %v2211 = vtanh.pop %v2194
        %v2212 = vtanh.pop %v2138
        %v2213 = vtanh.pop %v2196
        %v2214 = vpack.c.bf16 %v2200, %v2198
        %v2215 = vpack.c.bf16 %v2201, %v2199
        %v2216 = vpack.c.bf16 %v2204, %v2202
        %v2217 = vpack.c.bf16 %v2205, %v2203
        %v2218 = vpack.c.bf16 %v2208, %v2206
        %v2219 = vpack.c.bf16 %v2209, %v2207
        %v2220 = vpack.c.bf16 %v2212, %v2210
        %v2221 = vpack.c.bf16 %v2213, %v2211
        %s2222 = scalar_lea.vmem [#allocation2], 1024
        %v2223 = vld [vmem:[%s2222] sm:$0xff]
        %v2224 = vld [vmem:[%s2222 + $0x8] sm:$0xff]
        %v2225 = vld [vmem:[%s2222 + $0x10] sm:$0xff]
        %v2226 = vld [vmem:[%s2222 + $0x18] sm:$0xff]
        %v2227 = vld [vmem:[%s2222 + $0x20] sm:$0xff]
        %v2228 = vld [vmem:[%s2222 + $0x28] sm:$0xff]
        %v2229 = vld [vmem:[%s2222 + $0x30] sm:$0xff]
        %v2230 = vld [vmem:[%s2222 + $0x38] sm:$0xff]
        %v2231 = vld [vmem:[%s2222 + $0x40] sm:$0xff]
        %v2232 = vld [vmem:[%s2222 + $0x48] sm:$0xff]
        %v2233 = vld [vmem:[%s2222 + $0x50] sm:$0xff]
        %v2234 = vld [vmem:[%s2222 + $0x58] sm:$0xff]
        %v2235 = vld [vmem:[%s2222 + $0x60] sm:$0xff]
        %v2236 = vld [vmem:[%s2222 + $0x68] sm:$0xff]
        %v2237 = vld [vmem:[%s2222 + $0x70] sm:$0xff]
        %v2238 = vld [vmem:[%s2222 + $0x78] sm:$0xff]
        %v2239 = vld [vmem:[%s2222 + $0x80] sm:$0xff]
        %v2240 = vld [vmem:[%s2222 + $0x88] sm:$0xff]
        %v2241 = vld [vmem:[%s2222 + $0x90] sm:$0xff]
        %v2242 = vld [vmem:[%s2222 + $0x98] sm:$0xff]
        %v2243 = vld [vmem:[%s2222 + $0xa0] sm:$0xff]
        %v2244 = vld [vmem:[%s2222 + $0xa8] sm:$0xff]
        %v2245 = vld [vmem:[%s2222 + $0xb0] sm:$0xff]
        %v2246 = vld [vmem:[%s2222 + $0xb8] sm:$0xff]
        %v2247 = vld [vmem:[%s2222 + $0xc0] sm:$0xff]
        %v2248 = vld [vmem:[%s2222 + $0xc8] sm:$0xff]
        %v2249 = vld [vmem:[%s2222 + $0xd0] sm:$0xff]
        %v2250 = vld [vmem:[%s2222 + $0xd8] sm:$0xff]
        %v2251 = vld [vmem:[%s2222 + $0xe0] sm:$0xff]
        %v2252 = vld [vmem:[%s2222 + $0xe8] sm:$0xff]
        %v2253 = vld [vmem:[%s2222 + $0xf0] sm:$0xff]
        %v2254 = vld [vmem:[%s2222 + $0xf8] sm:$0xff]
        %s2255 = scalar_lea.vmem %s7, 10
        %v2256 = vld [vmem:[%s2255] sm:$0x3]
        %v2258 = vperm.slane %v2256, 0
        %v2259 = vperm.slane %v2256, 1
        %v2294 = vunpack.c.l.b16 %v2223
        %v2295 = vunpack.c.h.b16 %v2223
        %v2296 = vunpack.c.l.b16 %v2224
        %v2297 = vunpack.c.h.b16 %v2224
        %v2298 = vunpack.c.l.b16 %v2225
        %v2299 = vunpack.c.h.b16 %v2225
        %v2300 = vunpack.c.l.b16 %v2226
        %v2301 = vunpack.c.h.b16 %v2226
        %v2302 = vunpack.c.l.b16 %v2227
        %v2303 = vunpack.c.h.b16 %v2227
        %v2304 = vunpack.c.l.b16 %v2228
        %v2305 = vunpack.c.h.b16 %v2228
        %v2306 = vunpack.c.l.b16 %v2229
        %v2307 = vunpack.c.h.b16 %v2229
        %v2308 = vunpack.c.l.b16 %v2230
        %v2309 = vunpack.c.h.b16 %v2230
        %v2310 = vunpack.c.l.b16 %v2231
        %v2311 = vunpack.c.h.b16 %v2231
        %v2312 = vunpack.c.l.b16 %v2232
        %v2313 = vunpack.c.h.b16 %v2232
        %v2314 = vunpack.c.l.b16 %v2233
        %v2315 = vunpack.c.h.b16 %v2233
        %v2316 = vunpack.c.l.b16 %v2234
        %v2317 = vunpack.c.h.b16 %v2234
        %v2318 = vunpack.c.l.b16 %v2235
        %v2319 = vunpack.c.h.b16 %v2235
        %v2320 = vunpack.c.l.b16 %v2236
        %v2321 = vunpack.c.h.b16 %v2236
        %v2322 = vunpack.c.l.b16 %v2237
        %v2323 = vunpack.c.h.b16 %v2237
        %v2324 = vunpack.c.l.b16 %v2238
        %v2325 = vunpack.c.h.b16 %v2238
        %v2326 = vunpack.c.l.b16 %v2239
        %v2327 = vunpack.c.h.b16 %v2239
        %v2328 = vunpack.c.l.b16 %v2240
        %v2329 = vunpack.c.h.b16 %v2240
        %v2330 = vunpack.c.l.b16 %v2241
        %v2331 = vunpack.c.h.b16 %v2241
        %v2332 = vunpack.c.l.b16 %v2242
        %v2333 = vunpack.c.h.b16 %v2242
        %v2334 = vunpack.c.l.b16 %v2243
        %v2335 = vunpack.c.h.b16 %v2243
        %v2336 = vunpack.c.l.b16 %v2244
        %v2337 = vunpack.c.h.b16 %v2244
        %v2338 = vunpack.c.l.b16 %v2245
        %v2339 = vunpack.c.h.b16 %v2245
        %v2340 = vunpack.c.l.b16 %v2246
        %v2341 = vunpack.c.h.b16 %v2246
        %v2342 = vunpack.c.l.b16 %v2247
        %v2343 = vunpack.c.h.b16 %v2247
        %v2344 = vunpack.c.l.b16 %v2248
        %v2345 = vunpack.c.h.b16 %v2248
        %v2346 = vunpack.c.l.b16 %v2249
        %v2347 = vunpack.c.h.b16 %v2249
        %v2348 = vunpack.c.l.b16 %v2250
        %v2349 = vunpack.c.h.b16 %v2250
        %v2350 = vunpack.c.l.b16 %v2251
        %v2351 = vunpack.c.h.b16 %v2251
        %v2352 = vunpack.c.l.b16 %v2252
        %v2353 = vunpack.c.h.b16 %v2252
        %v2354 = vunpack.c.l.b16 %v2253
        %v2355 = vunpack.c.h.b16 %v2253
        %v2356 = vunpack.c.l.b16 %v2254
        %v2357 = vunpack.c.h.b16 %v2254
        %v2358 = vpack.c.b16 %v2296, %v2294
        %v2359 = vpack.c.b16 %v2297, %v2295
        %v2360 = vpack.c.b16 %v2300, %v2298
        %v2361 = vpack.c.b16 %v2301, %v2299
        %v2362 = vpack.c.b16 %v2304, %v2302
        %v2363 = vpack.c.b16 %v2305, %v2303
        %v2364 = vpack.c.b16 %v2308, %v2306
        %v2365 = vpack.c.b16 %v2309, %v2307
        %v2366 = vpack.c.b16 %v2312, %v2310
        %v2367 = vpack.c.b16 %v2313, %v2311
        %v2368 = vpack.c.b16 %v2316, %v2314
        %v2369 = vpack.c.b16 %v2317, %v2315
        %v2370 = vpack.c.b16 %v2320, %v2318
        %v2371 = vpack.c.b16 %v2321, %v2319
        %v2372 = vpack.c.b16 %v2324, %v2322
        %v2373 = vpack.c.b16 %v2325, %v2323
        %v2374 = vpack.c.b16 %v2328, %v2326
        %v2375 = vpack.c.b16 %v2329, %v2327
        %v2376 = vpack.c.b16 %v2332, %v2330
        %v2377 = vpack.c.b16 %v2333, %v2331
        %v2378 = vpack.c.b16 %v2336, %v2334
        %v2379 = vpack.c.b16 %v2337, %v2335
        %v2380 = vpack.c.b16 %v2340, %v2338
        %v2381 = vpack.c.b16 %v2341, %v2339
        %v2382 = vpack.c.b16 %v2344, %v2342
        %v2383 = vpack.c.b16 %v2345, %v2343
        %v2384 = vpack.c.b16 %v2348, %v2346
        %v2385 = vpack.c.b16 %v2349, %v2347
        %v2386 = vpack.c.b16 %v2352, %v2350
        %v2387 = vpack.c.b16 %v2353, %v2351
        %v2388 = vpack.c.b16 %v2356, %v2354
        %v2389 = vpack.c.b16 %v2357, %v2355
        %2422 = vmatpush.bf16.msra.mxu0 %v2372
        %2423 = vmatpush.bf16.msra.mxu0 %v2370
        %2424 = vmatpush.bf16.msra.mxu0 %v2368
        %2425 = vmatpush.bf16.msra.mxu0 %v2366
        %2426 = vmatpush.bf16.msra.mxu0 %v2364
        %2427 = vmatpush.bf16.msra.mxu0 %v2362
        %2428 = vmatpush.bf16.msra.mxu0 %v2360
        %2429 = vmatpush.bf16.msra.mxu0 %v2358
        %2430 = vmatmul.bf16.gmra.mxu0 %v2214
        %v2431 = vpop.f32.mrf.mxu0
        %v2432 = vadd.f32 %v2258, %v2431
        %v2433 = vpop.f32.mrf.mxu0
        %v2434 = vadd.f32 %v2258, %v2433
        %2435 = vmatmul.bf16.gmra.mxu0 %v2216
        %v2436 = vpop.f32.mrf.mxu0
        %v2437 = vadd.f32 %v2258, %v2436
        %v2438 = vpop.f32.mrf.mxu0
        %v2439 = vadd.f32 %v2258, %v2438
        %2440 = vmatmul.bf16.gmra.mxu0 %v2218
        %v2441 = vpop.f32.mrf.mxu0
        %v2442 = vadd.f32 %v2258, %v2441
        %v2443 = vpop.f32.mrf.mxu0
        %v2444 = vadd.f32 %v2258, %v2443
        %2445 = vmatmul.bf16.gmra.mxu0 %v2220
        %v2446 = vpop.f32.mrf.mxu0
        %v2447 = vadd.f32 %v2258, %v2446
        %v2448 = vpop.f32.mrf.mxu0
        %v2449 = vadd.f32 %v2258, %v2448
        %2450 = vdwg.mxu0
        %2451 = vmatpush.bf16.msra.mxu0 %v2388
        %2452 = vmatpush.bf16.msra.mxu0 %v2386
        %2453 = vmatpush.bf16.msra.mxu0 %v2384
        %2454 = vmatpush.bf16.msra.mxu0 %v2382
        %2455 = vmatpush.bf16.msra.mxu0 %v2380
        %2456 = vmatpush.bf16.msra.mxu0 %v2378
        %2457 = vmatpush.bf16.msra.mxu0 %v2376
        %2458 = vmatpush.bf16.msra.mxu0 %v2374
        %2459 = vmatmul.bf16.gmra.mxu0 %v2215
        %v2460 = vpop.f32.mrf.mxu0
        %v2461 = vadd.f32 %v2432, %v2460
        %v2462 = vpop.f32.mrf.mxu0
        %v2463 = vadd.f32 %v2434, %v2462
        %2464 = vmatmul.bf16.gmra.mxu0 %v2217
        %v2465 = vpop.f32.mrf.mxu0
        %v2466 = vadd.f32 %v2437, %v2465
        %v2467 = vpop.f32.mrf.mxu0
        %v2468 = vadd.f32 %v2439, %v2467
        %2469 = vmatmul.bf16.gmra.mxu0 %v2219
        %v2470 = vpop.f32.mrf.mxu0
        %v2471 = vadd.f32 %v2442, %v2470
        %v2472 = vpop.f32.mrf.mxu0
        %v2473 = vadd.f32 %v2444, %v2472
        %2474 = vmatmul.bf16.gmra.mxu0 %v2221
        %v2475 = vpop.f32.mrf.mxu0
        %v2476 = vadd.f32 %v2447, %v2475
        %v2477 = vpop.f32.mrf.mxu0
        %v2478 = vadd.f32 %v2449, %v2477
        %2479 = vdwg.mxu0
        %2480 = vmatpush.bf16.msra.mxu0 %v2373
        %2481 = vmatpush.bf16.msra.mxu0 %v2371
        %2482 = vmatpush.bf16.msra.mxu0 %v2369
        %2483 = vmatpush.bf16.msra.mxu0 %v2367
        %2484 = vmatpush.bf16.msra.mxu0 %v2365
        %2485 = vmatpush.bf16.msra.mxu0 %v2363
        %2486 = vmatpush.bf16.msra.mxu0 %v2361
        %2487 = vmatpush.bf16.msra.mxu0 %v2359
        %2488 = vmatmul.bf16.gmra.mxu0 %v2214
        %v2489 = vpop.f32.mrf.mxu0
        %v2490 = vadd.f32 %v2259, %v2489
        %v2491 = vpop.f32.mrf.mxu0
        %v2492 = vadd.f32 %v2259, %v2491
        %2493 = vmatmul.bf16.gmra.mxu0 %v2216
        %v2494 = vpop.f32.mrf.mxu0
        %v2495 = vadd.f32 %v2259, %v2494
        %v2496 = vpop.f32.mrf.mxu0
        %v2497 = vadd.f32 %v2259, %v2496
        %2498 = vmatmul.bf16.gmra.mxu0 %v2218
        %v2499 = vpop.f32.mrf.mxu0
        %v2500 = vadd.f32 %v2259, %v2499
        %v2501 = vpop.f32.mrf.mxu0
        %v2502 = vadd.f32 %v2259, %v2501
        %2503 = vmatmul.bf16.gmra.mxu0 %v2220
        %v2504 = vpop.f32.mrf.mxu0
        %v2505 = vadd.f32 %v2259, %v2504
        %v2506 = vpop.f32.mrf.mxu0
        %v2507 = vadd.f32 %v2259, %v2506
        %2508 = vdwg.mxu0
        %2509 = vmatpush.bf16.msra.mxu0 %v2389
        %2510 = vmatpush.bf16.msra.mxu0 %v2387
        %2511 = vmatpush.bf16.msra.mxu0 %v2385
        %2512 = vmatpush.bf16.msra.mxu0 %v2383
        %2513 = vmatpush.bf16.msra.mxu0 %v2381
        %2514 = vmatpush.bf16.msra.mxu0 %v2379
        %2515 = vmatpush.bf16.msra.mxu0 %v2377
        %2516 = vmatpush.bf16.msra.mxu0 %v2375
        %2517 = vmatmul.bf16.gmra.mxu0 %v2215
        %v2518 = vpop.f32.mrf.mxu0
        %v2519 = vadd.f32 %v2490, %v2518
        %v2520 = vpop.f32.mrf.mxu0
        %v2521 = vadd.f32 %v2492, %v2520
        %2522 = vmatmul.bf16.gmra.mxu0 %v2217
        %v2523 = vpop.f32.mrf.mxu0
        %v2524 = vadd.f32 %v2495, %v2523
        %v2525 = vpop.f32.mrf.mxu0
        %v2526 = vadd.f32 %v2497, %v2525
        %2527 = vmatmul.bf16.gmra.mxu0 %v2219
        %v2528 = vpop.f32.mrf.mxu0
        %v2529 = vadd.f32 %v2500, %v2528
        %v2530 = vpop.f32.mrf.mxu0
        %v2531 = vadd.f32 %v2502, %v2530
        %2532 = vmatmul.bf16.gmra.mxu0 %v2221
        %v2533 = vpop.f32.mrf.mxu0
        %v2534 = vadd.f32 %v2505, %v2533
        %v2535 = vpop.f32.mrf.mxu0
        %v2536 = vadd.f32 %v2507, %v2535
        %2537 = vdwg.mxu0
        %v2538 = vmul.f32 %v2461, %v2519
        %v2539 = vmul.f32 %v2463, %v2521
        %v2540 = vmul.f32 %v2466, %v2524
        %v2541 = vmul.f32 %v2468, %v2526
        %v2542 = vmul.f32 %v2471, %v2529
        %v2543 = vmul.f32 %v2473, %v2531
        %v2544 = vmul.f32 %v2476, %v2534
        %v2545 = vmul.f32 %v2478, %v2536
        %vm2546 = vcmask 523264
        %v2547 = vsel %vm2546, %v2538, 0.0
        %2548 = vadd.xlane.f32.xlu0 %v2547
        %v2549 = vpop.xlane.xlu0 %2548
        %v2550 = vsel %vm2546, %v2539, 0.0
        %2551 = vadd.xlane.f32.xlu0 %v2550
        %v2552 = vpop.xlane.xlu0 %2551
        %v2553 = vsel %vm2546, %v2540, 0.0
        %2554 = vadd.xlane.f32.xlu0 %v2553
        %v2555 = vpop.xlane.xlu0 %2554
        %v2556 = vsel %vm2546, %v2541, 0.0
        %2557 = vadd.xlane.f32.xlu0 %v2556
        %v2558 = vpop.xlane.xlu0 %2557
        %v2559 = vsel %vm2546, %v2542, 0.0
        %2560 = vadd.xlane.f32.xlu0 %v2559
        %v2561 = vpop.xlane.xlu0 %2560
        %v2562 = vsel %vm2546, %v2543, 0.0
        %2563 = vadd.xlane.f32.xlu0 %v2562
        %v2564 = vpop.xlane.xlu0 %2563
        %v2565 = vsel %vm2546, %v2544, 0.0
        %2566 = vadd.xlane.f32.xlu0 %v2565
        %v2567 = vpop.xlane.xlu0 %2566
        %v2568 = vsel %vm2546, %v2545, 0.0
        %2569 = vadd.xlane.f32.xlu0 %v2568
        %v2570 = vpop.xlane.xlu0 %2569
        %2579 = vrot.lane.b32.xlu0 %v2519, 64
        %v2580 = vpop.permute.xlu0 %2579
        %2581 = vrot.lane.b32.xlu0 %v2521, 64
        %v2582 = vpop.permute.xlu0 %2581
        %2583 = vrot.lane.b32.xlu0 %v2524, 64
        %v2584 = vpop.permute.xlu0 %2583
        %2585 = vrot.lane.b32.xlu0 %v2526, 64
        %v2586 = vpop.permute.xlu0 %2585
        %2587 = vrot.lane.b32.xlu0 %v2529, 64
        %v2588 = vpop.permute.xlu0 %2587
        %2589 = vrot.lane.b32.xlu0 %v2531, 64
        %v2590 = vpop.permute.xlu0 %2589
        %2591 = vrot.lane.b32.xlu0 %v2534, 64
        %v2592 = vpop.permute.xlu0 %2591
        %2593 = vrot.lane.b32.xlu0 %v2536, 64
        %v2594 = vpop.permute.xlu0 %2593
        %v2603 = vmul.f32 %v2461, %v2580
        %v2604 = vmul.f32 %v2463, %v2582
        %v2605 = vmul.f32 %v2466, %v2584
        %v2606 = vmul.f32 %v2468, %v2586
        %v2607 = vmul.f32 %v2471, %v2588
        %v2608 = vmul.f32 %v2473, %v2590
        %v2609 = vmul.f32 %v2476, %v2592
        %v2610 = vmul.f32 %v2478, %v2594
        %2619 = vrot.lane.b32.xlu0 %v2603, 64
        %v2620 = vpop.permute.xlu0 %2619
        %2621 = vrot.lane.b32.xlu0 %v2604, 64
        %v2622 = vpop.permute.xlu0 %2621
        %2623 = vrot.lane.b32.xlu0 %v2605, 64
        %v2624 = vpop.permute.xlu0 %2623
        %2625 = vrot.lane.b32.xlu0 %v2606, 64
        %v2626 = vpop.permute.xlu0 %2625
        %2627 = vrot.lane.b32.xlu0 %v2607, 64
        %v2628 = vpop.permute.xlu0 %2627
        %2629 = vrot.lane.b32.xlu0 %v2608, 64
        %v2630 = vpop.permute.xlu0 %2629
        %2631 = vrot.lane.b32.xlu0 %v2609, 64
        %v2632 = vpop.permute.xlu0 %2631
        %2633 = vrot.lane.b32.xlu0 %v2610, 64
        %v2634 = vpop.permute.xlu0 %2633
        %v2643 = vsel %vm2546, %v2620, 0.0
        %2644 = vadd.xlane.f32.xlu0 %v2643
        %v2645 = vpop.xlane.xlu0 %2644
        %v2646 = vsel %vm2546, %v2622, 0.0
        %2647 = vadd.xlane.f32.xlu0 %v2646
        %v2648 = vpop.xlane.xlu0 %2647
        %v2649 = vsel %vm2546, %v2624, 0.0
        %2650 = vadd.xlane.f32.xlu0 %v2649
        %v2651 = vpop.xlane.xlu0 %2650
        %v2652 = vsel %vm2546, %v2626, 0.0
        %2653 = vadd.xlane.f32.xlu0 %v2652
        %v2654 = vpop.xlane.xlu0 %2653
        %v2655 = vsel %vm2546, %v2628, 0.0
        %2656 = vadd.xlane.f32.xlu0 %v2655
        %v2657 = vpop.xlane.xlu0 %2656
        %v2658 = vsel %vm2546, %v2630, 0.0
        %2659 = vadd.xlane.f32.xlu0 %v2658
        %v2660 = vpop.xlane.xlu0 %2659
        %v2661 = vsel %vm2546, %v2632, 0.0
        %2662 = vadd.xlane.f32.xlu0 %v2661
        %v2663 = vpop.xlane.xlu0 %2662
        %v2664 = vsel %vm2546, %v2634, 0.0
        %2665 = vadd.xlane.f32.xlu0 %v2664
        %v2666 = vpop.xlane.xlu0 %2665
        %vm2667 = vcmask 7168
        %v2668 = vsel %vm2667, %v2549, %v2645
        %v2669 = vsel %vm2667, %v2552, %v2648
        %v2670 = vsel %vm2667, %v2555, %v2651
        %v2671 = vsel %vm2667, %v2558, %v2654
        %v2672 = vsel %vm2667, %v2561, %v2657
        %v2673 = vsel %vm2667, %v2564, %v2660
        %v2674 = vsel %vm2667, %v2567, %v2663
        %v2675 = vsel %vm2667, %v2570, %v2666
        %vm2676 = vcmask 15360
        %2677 = vst.msk [vmem:[%s368] sm:$0xff] %vm2676, %v2668
        %2678 = vst.msk [vmem:[%s368 + $0x8] sm:$0xff] %vm2676, %v2669
        %2679 = vst.msk [vmem:[%s368 + $0x10] sm:$0xff] %vm2676, %v2670
        %2680 = vst.msk [vmem:[%s368 + $0x18] sm:$0xff] %vm2676, %v2671
        %2681 = vst.msk [vmem:[%s368 + $0x20] sm:$0xff] %vm2676, %v2672
        %2682 = vst.msk [vmem:[%s368 + $0x28] sm:$0xff] %vm2676, %v2673
        %2683 = vst.msk [vmem:[%s368 + $0x30] sm:$0xff] %vm2676, %v2674
        %2684 = vst.msk [vmem:[%s368 + $0x38] sm:$0xff] %vm2676, %v2675
        %s2685 = smul.u32 8, %s20
        %p2686 = scmp.lt.s32.totalorder %s2685, 31
        %s2687 = scalar_select %p2686, %s2685, 31
        %s2688 = smul.addr %s2687, 8
        %s2689 = scalar_lea.vmem %s8, %s2688
        // Predicated region
        $region57: #{tpu_custom_call.1} parent=51 // pred_check
          %p2690 = pneg %p221
        $region58: #{tpu_custom_call.1} parent=51 // pred_check_branch
          %2692 = sbr.rel (%p2690) target = $region60
        $region59: #{tpu_custom_call.1} parent=51 // pred_region
          %s2693 = smul.u32 8, %s20
        $region60: #{tpu_custom_call.1} parent=51 // pred_fallthru
          _
      $region52: #{tpu_custom_call.1} parent=5 // pred_fallthru
        _
      %p2694 = scmp.le.s32.totalorder 2, %s15
      // Predicated region
      $region61: #{tpu_custom_call.1} parent=5 // pred_check
        %p2695 = pneg %p2694
      $region62: #{tpu_custom_call.1} parent=5 // pred_check_branch
        %2697 = sbr.rel (%p2695) target = $region64
      $region63: #{tpu_custom_call.1} parent=5 // pred_region
        %s2698 = ssub.s32 %s15, 2
        // Predicated region
        $region65: #{tpu_custom_call.1} parent=63 // pred_check
          %p2699 = pneg %p227
        $region66: #{tpu_custom_call.1} parent=63 // pred_check_branch
          %2701 = sbr.rel (%p2699) target = $region68
        $region67: #{tpu_custom_call.1} parent=63 // pred_region
          %s2702 = smul.u32 8, %s21
          %p2703 = scmp.lt.s32.totalorder %s2702, 31
          %s2704 = scalar_select %p2703, %s2702, 31
          %s2705 = smul.addr %s2704, 8
          %s2706 = scalar_lea.vmem %s8, %s2705
        $region68: #{tpu_custom_call.1} parent=63 // pred_fallthru
          _
      $region64: #{tpu_custom_call.1} parent=5 // pred_fallthru
        _
    $region6: #{tpu_custom_call.1} parent=1 // loop_footer
      %s19 = sadd.s32 1, %s15
    $region7: #{tpu_custom_call.1} parent=1 // loop_footer_branch
      %14 = sbr.rel target = $region3
    $region8: #{tpu_custom_call.1} parent=1 // loop_exit
      _
    %2707 = vsyncpa [#allocation3], 1
    %s2708 = scalar_lea.sflag [#allocation3], 1
    %2709 = vsyncpa %s2708, 1

</llo_original>
